<compile_context>
chip_gen: v5e
topology: v5e:2x2
jax: 0.10.0
libtpu: 0.0.40
codegen_flags: <defaults>
</compile_context>

<pallas_src>
import functools

import jax
import jax.numpy as jnp
from jax import lax
from jax.experimental import pallas as pl
from jax.experimental.pallas import tpu as pltpu


def _mhsa_kernel(x_ref, wqkv_ref, bqkv_ref, wo_ref, bo_ref, o_ref,
                 qkv_ref, cat_ref, *, num_heads, precision, approx_recip):
    S, D = x_ref.shape
    hd = D // num_heads
    mxu_dtype = wqkv_ref.dtype          # bf16 (prod) or f32 (exact check) MXU inputs

    x = x_ref[...].astype(mxu_dtype)                                  # (S, D)

    # Fused lane-dense QKV projection: one (S, D) @ (D, 3D) GEMM, f32 accumulation.
    # 1/sqrt(hd) is already folded into the Q columns of Wqkv / bqkv by the wrapper.
    qkv = jnp.dot(x, wqkv_ref[...], preferred_element_type=jnp.float32,
                  precision=precision)
    # Park the biased result once in (bf16) VMEM scratch: halves the largest live
    # intermediate and removes per-head f32->bf16 casts inside the unrolled loop.
    qkv_ref[...] = (qkv + bqkv_ref[...]).astype(mxu_dtype)            # (S, 3D)

    # Per-head attention. num_heads is a compile-time constant, so this loop is
    # statically unrolled and every slice below has static lane offsets.
    # TODO(synk): flash-style KV tiling (online softmax) for S >~ 1024 so the (S,S)
    # scores tile fits VMEM (mandatory on v7x's 64 MiB), plus a second "parallel"
    # query-tile grid axis so both v7x TensorCores get work when B is 1 or odd.
    for h in range(num_heads):
        lo = h * hd
        q = qkv_ref[:, lo:lo + hd]                                    # (S, hd)
        k = qkv_ref[:, D + lo:D + lo + hd]                            # (S, hd)
        v = qkv_ref[:, 2 * D + lo:2 * D + lo + hd]                    # (S, hd)

        # scores = q @ k^T without materializing k.T: contract the last dims directly.
        s = lax.dot_general(q, k, (((1,), (1,)), ((), ())),
                            preferred_element_type=jnp.float32,
                            precision=precision)                      # (S, S) f32
        s = s - jnp.max(s, axis=-1, keepdims=True)
        e = jnp.exp(s)                                                # (S, S) f32
        # Fold the softmax normalization into the PV output (row scaling commutes
        # with the matmul): S*hd VPU multiplies instead of S*S, single pass over e.
        recip = pl.reciprocal(jnp.sum(e, axis=-1, keepdims=True), approx=approx_recip)
        pv = jnp.dot(e.astype(mxu_dtype), v,
                     preferred_element_type=jnp.float32,
                     precision=precision)                             # (S, hd) f32
        # Store this head directly at its static lane offset (== rearrange_out),
        # no concatenate copy, releases the head registers immediately.
        cat_ref[:, lo:lo + hd] = (pv * recip).astype(mxu_dtype)
        # TODO(synk): attention dropout (dropout_p is not None) not implemented;
        # this kernel covers the dropout_p=None / eval path only.

    # ONE dense (S, D) @ (D, D) output projection + bias.
    out = jnp.dot(cat_ref[...], wo_ref[...],
                  preferred_element_type=jnp.float32, precision=precision)
    o_ref[...] = (out + bo_ref[...]).astype(o_ref.dtype)


def multi_head_self_attention(x, params, num_heads, *, use_bf16=True):
    """x: (B, S, D) float32. params: PyTorch-convention (Wq,bq,Wk,bk,Wv,bv,Wo,bo)."""
    wq, bq, wk, bk, wv, bv, wo, bo = params
    B, S, D = x.shape
    assert D % num_heads == 0, "d_model must be divisible by num_heads"
    hd = D // num_heads
    scale = float(hd) ** -0.5

    # bf16 for MXU inputs in prod; f32 + HIGHEST precision for the exact-semantics path.
    w_dtype = jnp.bfloat16 if use_bf16 else jnp.float32
    precision = None if use_bf16 else lax.Precision.HIGHEST

    # Fused QKV weight, columns ordered [Q | K | V]; per-head column blocks inside each
    # third match torch's rearrange_qvk. Fold the dot-product scale into Q's columns/bias.
    wqkv = jnp.concatenate([wq.T * scale, wk.T, wv.T], axis=1).astype(w_dtype)  # (D, 3D)
    bqkv = jnp.concatenate([bq * scale, bk, bv]).reshape(1, 3 * D).astype(jnp.float32)
    wo_t = wo.T.astype(w_dtype)                                                  # (D, D)
    bo_2d = bo.reshape(1, D).astype(jnp.float32)

    kernel = functools.partial(_mhsa_kernel, num_heads=num_heads,
                               precision=precision, approx_recip=bool(use_bf16))

    # Raise the scoped VMEM limit above the 16/32 MiB defaults, with headroom below
    # the physical capacity (128 MiB v5e/v6e -> ~100 MiB, 64 MiB v7x -> ~56 MiB).
    try:
        cap = pltpu.get_tpu_info().vmem_capacity_bytes
        vmem_limit = int(min(100 * 1024 * 1024, cap * 7 // 8))
    except Exception:
        vmem_limit = 56 * 1024 * 1024

    wbytes = jnp.dtype(w_dtype).itemsize
    cost = pl.CostEstimate(
        flops=int(B * (8 * S * D * D + 4 * S * S * D)),     # qkv + scores + pv + out proj
        transcendentals=int(B * num_heads * S * S),         # exp in the softmax
        bytes_accessed=int(2 * B * S * D * 4 + 4 * D * D * wbytes + 4 * D * 4),
    )

    # TODO(synk): for very large D (8*D^2 weight bytes no longer VMEM-resident alongside
    # activations), stream Wqkv column blocks instead of constant-index_map residency.
    return pl.pallas_call(
        kernel,
        out_shape=jax.ShapeDtypeStruct((B, S, D), jnp.float32),
        grid_spec=pltpu.PrefetchScalarGridSpec(
            num_scalar_prefetch=0,
            grid=(B,),                                            # one step per batch sample
            in_specs=[
                pl.BlockSpec((None, S, D), lambda b: (b, 0, 0)),  # x: squeezed batch dim
                pl.BlockSpec((D, 3 * D), lambda b: (0, 0)),       # Wqkv: VMEM-resident
                pl.BlockSpec((1, 3 * D), lambda b: (0, 0)),       # bqkv: VMEM-resident
                pl.BlockSpec((D, D), lambda b: (0, 0)),           # Wo^T: VMEM-resident
                pl.BlockSpec((1, D), lambda b: (0, 0)),           # bo:   VMEM-resident
            ],
            out_specs=pl.BlockSpec((None, S, D), lambda b: (b, 0, 0)),
            scratch_shapes=[
                pltpu.VMEM((S, 3 * D), w_dtype),   # parked QKV (bf16 in prod path)
                pltpu.VMEM((S, D), w_dtype),       # concatenated head outputs
            ],
        ),
        compiler_params=pltpu.CompilerParams(
            dimension_semantics=("parallel",),                    # megacore: split batches
            vmem_limit_bytes=vmem_limit),
        cost_estimate=cost,
    )(x, wqkv, bqkv, wo_t, bo_2d)


def _reference_mhsa(x, params, num_heads):
    """Pure-JAX reference mirroring the PyTorch forward exactly (f32, HIGHEST matmuls)."""
    wq, bq, wk, bk, wv, bv, wo, bo = params
    B, S, D = x.shape
    hd = D // num_heads
    hp = lax.Precision.HIGHEST

    q = jnp.dot(x, wq.T, precision=hp) + bq
    k = jnp.dot(x, wk.T, precision=hp) + bk
    v = jnp.dot(x, wv.T, precision=hp) + bv

    def split(t):
        return t.reshape(B, S, num_heads, hd).transpose(0, 2, 1, 3)

    qh, kh, vh = split(q), split(k), split(v)
    dp = (float(hd) ** -0.5) * jnp.einsum('bhsd,bhtd->bhst', qh, kh, precision=hp)
    att = jax.nn.softmax(dp, axis=-1)
    out = jnp.einsum('bhst,bhtd->bhsd', att, vh, precision=hp)
    out = out.transpose(0, 2, 1, 3).reshape(B, S, D)
    return jnp.dot(out, wo.T, precision=hp) + bo


if __name__ == "__main__":
    B, S, D, H = 2, 8, 32, 4   # batch, seq, d_model, num_heads

    key = jax.random.PRNGKey(0)
    keys = jax.random.split(key, 9)
    init = lambda k, shape: (jax.random.uniform(k, shape, jnp.float32) - 0.5) * 0.2

    params = (
        init(keys[0], (D, D)), init(keys[1], (D,)),   # Wq, bq
        init(keys[2], (D, D)), init(keys[3], (D,)),   # Wk, bk
        init(keys[4], (D, D)), init(keys[5], (D,)),   # Wv, bv
        init(keys[6], (D, D)), init(keys[7], (D,)),   # Wo, bo
    )
    x = jax.random.normal(keys[8], (B, S, D), jnp.float32)

    ref = _reference_mhsa(x, params, H)

    # Exact-semantics check: f32 MXU inputs, HIGHEST precision, exact reciprocal.
    out_f32 = jax.block_until_ready(
        multi_head_self_attention(x, params, H, use_bf16=False))
    assert out_f32.shape == (B, S, D)
    err32 = float(jnp.max(jnp.abs(out_f32 - ref)))
    assert jnp.allclose(out_f32, ref, rtol=1e-4, atol=1e-4), (
        f"f32 mismatch vs reference (max abs err {err32:.3e})")

    # Production path: bf16 MXU inputs, approx EUP reciprocal (bf16-level tolerance).
    out = jax.block_until_ready(multi_head_self_attention(x, params, H, use_bf16=True))
    assert out.shape == (B, S, D)
    errbf = float(jnp.max(jnp.abs(out - ref)))
    assert jnp.allclose(out, ref, rtol=2e-2, atol=2e-2), (
        f"bf16 mismatch vs reference (max abs err {errbf:.3e})")

    print("KERNEL_OK")
</pallas_src>

<mosaic_0001>
module attributes {stable_mosaic.version = 11 : i64} {
  func.func @_mhsa_kernel(%arg0: i32, %arg1: memref<1x8x32xf32, #tpu.memory_space<vmem>>, %arg2: memref<32x96xf32, #tpu.memory_space<vmem>>, %arg3: memref<1x96xf32, #tpu.memory_space<vmem>>, %arg4: memref<32x32xf32, #tpu.memory_space<vmem>>, %arg5: memref<1x32xf32, #tpu.memory_space<vmem>>, %arg6: memref<1x8x32xf32, #tpu.memory_space<vmem>>, %arg7: memref<8x96xf32, #tpu.memory_space<vmem>>, %arg8: memref<8x32xf32, #tpu.memory_space<vmem>>) attributes {dimension_semantics = [#tpu.dimension_semantics<parallel>], iteration_bounds = array<i64: 2>, scalar_prefetch = 0 : i64, scratch_operands = 2 : i64, tpu.core_type = #tpu.core_type<tc>, window_params = [{transform_indices = @transform_0, window_bounds = array<i64: 1, 8, 32>}, {pipeline_mode = #tpu.pipeline_mode<synchronous>, transform_indices = @transform_1, window_bounds = array<i64: 32, 96>}, {pipeline_mode = #tpu.pipeline_mode<synchronous>, transform_indices = @transform_2, window_bounds = array<i64: 1, 96>}, {pipeline_mode = #tpu.pipeline_mode<synchronous>, transform_indices = @transform_3, window_bounds = array<i64: 32, 32>}, {pipeline_mode = #tpu.pipeline_mode<synchronous>, transform_indices = @transform_4, window_bounds = array<i64: 1, 32>}, {transform_indices = @transform_5, window_bounds = array<i64: 1, 8, 32>}]} {
    %c0 = arith.constant 0 : index
    %c0_0 = arith.constant 0 : index
    %c0_1 = arith.constant 0 : index
    %0 = vector.load %arg1[%c0, %c0_0, %c0_1] : memref<1x8x32xf32, #tpu.memory_space<vmem>>, vector<1x8x32xf32>
    %1 = vector.shape_cast %0 : vector<1x8x32xf32> to vector<8x32xf32>
    %c0_2 = arith.constant 0 : index
    %c0_3 = arith.constant 0 : index
    %2 = vector.load %arg2[%c0_2, %c0_3] : memref<32x96xf32, #tpu.memory_space<vmem>>, vector<32x96xf32>
    %cst = arith.constant dense<0.000000e+00> : vector<8x96xf32>
    %3 = tpu.matmul %1, %2, %cst {dimension_numbers = #tpu.dot_dimension_numbers<[1], [0], [0], [1], [0, 0, 1, 1], [], []>, precision = #tpu.contract_precision<fp32>} : vector<8x32xf32>, vector<32x96xf32>, vector<8x96xf32> -> vector<8x96xf32>
    %c0_4 = arith.constant 0 : index
    %c0_5 = arith.constant 0 : index
    %4 = vector.load %arg3[%c0_4, %c0_5] : memref<1x96xf32, #tpu.memory_space<vmem>>, vector<1x96xf32>
    %5 = vector.broadcast %4 : vector<1x96xf32> to vector<8x96xf32>
    %6 = arith.addf %3, %5 : vector<8x96xf32>
    %c0_6 = arith.constant 0 : index
    %c0_7 = arith.constant 0 : index
    %7 = vector.load %arg7[%c0_6, %c0_7] : memref<8x96xf32, #tpu.memory_space<vmem>>, vector<8x96xf32>
    tpu.vector_store %arg7[%c0_6, %c0_7], %6 {strides = array<i32>} : memref<8x96xf32, #tpu.memory_space<vmem>>, vector<8x96xf32>,
    %c0_8 = arith.constant 0 : index
    %c0_9 = arith.constant 0 : index
    %8 = vector.load %arg7[%c0_8, %c0_9] : memref<8x96xf32, #tpu.memory_space<vmem>>, vector<8x8xf32>
    %c0_10 = arith.constant 0 : index
    %c32 = arith.constant 32 : index
    %9 = vector.load %arg7[%c0_10, %c32] : memref<8x96xf32, #tpu.memory_space<vmem>>, vector<8x8xf32>
    %c0_11 = arith.constant 0 : index
    %c64 = arith.constant 64 : index
    %10 = vector.load %arg7[%c0_11, %c64] : memref<8x96xf32, #tpu.memory_space<vmem>>, vector<8x8xf32>
    %cst_12 = arith.constant dense<0.000000e+00> : vector<8x8xf32>
    %11 = tpu.matmul %8, %9, %cst_12 {dimension_numbers = #tpu.dot_dimension_numbers<[1], [1], [0], [0], [0, 0, 1, 0], [], []>, precision = #tpu.contract_precision<fp32>} : vector<8x8xf32>, vector<8x8xf32>, vector<8x8xf32> -> vector<8x8xf32>
    %cst_13 = arith.constant dense<0xFF800000> : vector<8xf32>
    %12 = vector.multi_reduction <maximumf>, %11, %cst_13 [1] : vector<8x8xf32> to vector<8xf32>
    %13 = vector.shape_cast %12 : vector<8xf32> to vector<8x1xf32>
    %14 = vector.broadcast %13 : vector<8x1xf32> to vector<8x8xf32>
    %15 = arith.subf %11, %14 : vector<8x8xf32>
    %16 = math.exp %15 : vector<8x8xf32>
    %cst_14 = arith.constant dense<0.000000e+00> : vector<8xf32>
    %17 = vector.multi_reduction <add>, %16, %cst_14 [1] : vector<8x8xf32> to vector<8xf32>
    %18 = vector.shape_cast %17 : vector<8xf32> to vector<8x1xf32>
    %19 = tpu.reciprocal %18 : vector<8x1xf32> -> vector<8x1xf32>
    %cst_15 = arith.constant dense<0.000000e+00> : vector<8x8xf32>
    %20 = tpu.matmul %16, %10, %cst_15 {dimension_numbers = #tpu.dot_dimension_numbers<[1], [0], [0], [1], [0, 0, 1, 1], [], []>, precision = #tpu.contract_precision<fp32>} : vector<8x8xf32>, vector<8x8xf32>, vector<8x8xf32> -> vector<8x8xf32>
    %21 = vector.broadcast %19 : vector<8x1xf32> to vector<8x8xf32>
    %22 = arith.mulf %20, %21 : vector<8x8xf32>
    %c0_16 = arith.constant 0 : index
    %c0_17 = arith.constant 0 : index
    %23 = vector.load %arg8[%c0_16, %c0_17] : memref<8x32xf32, #tpu.memory_space<vmem>>, vector<8x8xf32>
    tpu.vector_store %arg8[%c0_16, %c0_17], %22 {strides = array<i32>} : memref<8x32xf32, #tpu.memory_space<vmem>>, vector<8x8xf32>,
    %c0_18 = arith.constant 0 : index
    %c8 = arith.constant 8 : index
    %24 = vector.load %arg7[%c0_18, %c8] : memref<8x96xf32, #tpu.memory_space<vmem>>, vector<8x8xf32>
    %c0_19 = arith.constant 0 : index
    %c40 = arith.constant 40 : index
    %25 = vector.load %arg7[%c0_19, %c40] : memref<8x96xf32, #tpu.memory_space<vmem>>, vector<8x8xf32>
    %c0_20 = arith.constant 0 : index
    %c72 = arith.constant 72 : index
    %26 = vector.load %arg7[%c0_20, %c72] : memref<8x96xf32, #tpu.memory_space<vmem>>, vector<8x8xf32>
    %cst_21 = arith.constant dense<0.000000e+00> : vector<8x8xf32>
    %27 = tpu.matmul %24, %25, %cst_21 {dimension_numbers = #tpu.dot_dimension_numbers<[1], [1], [0], [0], [0, 0, 1, 0], [], []>, precision = #tpu.contract_precision<fp32>} : vector<8x8xf32>, vector<8x8xf32>, vector<8x8xf32> -> vector<8x8xf32>
    %cst_22 = arith.constant dense<0xFF800000> : vector<8xf32>
    %28 = vector.multi_reduction <maximumf>, %27, %cst_22 [1] : vector<8x8xf32> to vector<8xf32>
    %29 = vector.shape_cast %28 : vector<8xf32> to vector<8x1xf32>
    %30 = vector.broadcast %29 : vector<8x1xf32> to vector<8x8xf32>
    %31 = arith.subf %27, %30 : vector<8x8xf32>
    %32 = math.exp %31 : vector<8x8xf32>
    %cst_23 = arith.constant dense<0.000000e+00> : vector<8xf32>
    %33 = vector.multi_reduction <add>, %32, %cst_23 [1] : vector<8x8xf32> to vector<8xf32>
    %34 = vector.shape_cast %33 : vector<8xf32> to vector<8x1xf32>
    %35 = tpu.reciprocal %34 : vector<8x1xf32> -> vector<8x1xf32>
    %cst_24 = arith.constant dense<0.000000e+00> : vector<8x8xf32>
    %36 = tpu.matmul %32, %26, %cst_24 {dimension_numbers = #tpu.dot_dimension_numbers<[1], [0], [0], [1], [0, 0, 1, 1], [], []>, precision = #tpu.contract_precision<fp32>} : vector<8x8xf32>, vector<8x8xf32>, vector<8x8xf32> -> vector<8x8xf32>
    %37 = vector.broadcast %35 : vector<8x1xf32> to vector<8x8xf32>
    %38 = arith.mulf %36, %37 : vector<8x8xf32>
    %c0_25 = arith.constant 0 : index
    %c8_26 = arith.constant 8 : index
    %39 = vector.load %arg8[%c0_25, %c8_26] : memref<8x32xf32, #tpu.memory_space<vmem>>, vector<8x8xf32>
    tpu.vector_store %arg8[%c0_25, %c8_26], %38 {strides = array<i32>} : memref<8x32xf32, #tpu.memory_space<vmem>>, vector<8x8xf32>,
    %c0_27 = arith.constant 0 : index
    %c16 = arith.constant 16 : index
    %40 = vector.load %arg7[%c0_27, %c16] : memref<8x96xf32, #tpu.memory_space<vmem>>, vector<8x8xf32>
    %c0_28 = arith.constant 0 : index
    %c48 = arith.constant 48 : index
    %41 = vector.load %arg7[%c0_28, %c48] : memref<8x96xf32, #tpu.memory_space<vmem>>, vector<8x8xf32>
    %c0_29 = arith.constant 0 : index
    %c80 = arith.constant 80 : index
    %42 = vector.load %arg7[%c0_29, %c80] : memref<8x96xf32, #tpu.memory_space<vmem>>, vector<8x8xf32>
    %cst_30 = arith.constant dense<0.000000e+00> : vector<8x8xf32>
    %43 = tpu.matmul %40, %41, %cst_30 {dimension_numbers = #tpu.dot_dimension_numbers<[1], [1], [0], [0], [0, 0, 1, 0], [], []>, precision = #tpu.contract_precision<fp32>} : vector<8x8xf32>, vector<8x8xf32>, vector<8x8xf32> -> vector<8x8xf32>
    %cst_31 = arith.constant dense<0xFF800000> : vector<8xf32>
    %44 = vector.multi_reduction <maximumf>, %43, %cst_31 [1] : vector<8x8xf32> to vector<8xf32>
    %45 = vector.shape_cast %44 : vector<8xf32> to vector<8x1xf32>
    %46 = vector.broadcast %45 : vector<8x1xf32> to vector<8x8xf32>
    %47 = arith.subf %43, %46 : vector<8x8xf32>
    %48 = math.exp %47 : vector<8x8xf32>
    %cst_32 = arith.constant dense<0.000000e+00> : vector<8xf32>
    %49 = vector.multi_reduction <add>, %48, %cst_32 [1] : vector<8x8xf32> to vector<8xf32>
    %50 = vector.shape_cast %49 : vector<8xf32> to vector<8x1xf32>
    %51 = tpu.reciprocal %50 : vector<8x1xf32> -> vector<8x1xf32>
    %cst_33 = arith.constant dense<0.000000e+00> : vector<8x8xf32>
    %52 = tpu.matmul %48, %42, %cst_33 {dimension_numbers = #tpu.dot_dimension_numbers<[1], [0], [0], [1], [0, 0, 1, 1], [], []>, precision = #tpu.contract_precision<fp32>} : vector<8x8xf32>, vector<8x8xf32>, vector<8x8xf32> -> vector<8x8xf32>
    %53 = vector.broadcast %51 : vector<8x1xf32> to vector<8x8xf32>
    %54 = arith.mulf %52, %53 : vector<8x8xf32>
    %c0_34 = arith.constant 0 : index
    %c16_35 = arith.constant 16 : index
    %55 = vector.load %arg8[%c0_34, %c16_35] : memref<8x32xf32, #tpu.memory_space<vmem>>, vector<8x8xf32>
    tpu.vector_store %arg8[%c0_34, %c16_35], %54 {strides = array<i32>} : memref<8x32xf32, #tpu.memory_space<vmem>>, vector<8x8xf32>,
    %c0_36 = arith.constant 0 : index
    %c24 = arith.constant 24 : index
    %56 = vector.load %arg7[%c0_36, %c24] : memref<8x96xf32, #tpu.memory_space<vmem>>, vector<8x8xf32>
    %c0_37 = arith.constant 0 : index
    %c56 = arith.constant 56 : index
    %57 = vector.load %arg7[%c0_37, %c56] : memref<8x96xf32, #tpu.memory_space<vmem>>, vector<8x8xf32>
    %c0_38 = arith.constant 0 : index
    %c88 = arith.constant 88 : index
    %58 = vector.load %arg7[%c0_38, %c88] : memref<8x96xf32, #tpu.memory_space<vmem>>, vector<8x8xf32>
    %cst_39 = arith.constant dense<0.000000e+00> : vector<8x8xf32>
    %59 = tpu.matmul %56, %57, %cst_39 {dimension_numbers = #tpu.dot_dimension_numbers<[1], [1], [0], [0], [0, 0, 1, 0], [], []>, precision = #tpu.contract_precision<fp32>} : vector<8x8xf32>, vector<8x8xf32>, vector<8x8xf32> -> vector<8x8xf32>
    %cst_40 = arith.constant dense<0xFF800000> : vector<8xf32>
    %60 = vector.multi_reduction <maximumf>, %59, %cst_40 [1] : vector<8x8xf32> to vector<8xf32>
    %61 = vector.shape_cast %60 : vector<8xf32> to vector<8x1xf32>
    %62 = vector.broadcast %61 : vector<8x1xf32> to vector<8x8xf32>
    %63 = arith.subf %59, %62 : vector<8x8xf32>
    %64 = math.exp %63 : vector<8x8xf32>
    %cst_41 = arith.constant dense<0.000000e+00> : vector<8xf32>
    %65 = vector.multi_reduction <add>, %64, %cst_41 [1] : vector<8x8xf32> to vector<8xf32>
    %66 = vector.shape_cast %65 : vector<8xf32> to vector<8x1xf32>
    %67 = tpu.reciprocal %66 : vector<8x1xf32> -> vector<8x1xf32>
    %cst_42 = arith.constant dense<0.000000e+00> : vector<8x8xf32>
    %68 = tpu.matmul %64, %58, %cst_42 {dimension_numbers = #tpu.dot_dimension_numbers<[1], [0], [0], [1], [0, 0, 1, 1], [], []>, precision = #tpu.contract_precision<fp32>} : vector<8x8xf32>, vector<8x8xf32>, vector<8x8xf32> -> vector<8x8xf32>
    %69 = vector.broadcast %67 : vector<8x1xf32> to vector<8x8xf32>
    %70 = arith.mulf %68, %69 : vector<8x8xf32>
    %c0_43 = arith.constant 0 : index
    %c24_44 = arith.constant 24 : index
    %71 = vector.load %arg8[%c0_43, %c24_44] : memref<8x32xf32, #tpu.memory_space<vmem>>, vector<8x8xf32>
    tpu.vector_store %arg8[%c0_43, %c24_44], %70 {strides = array<i32>} : memref<8x32xf32, #tpu.memory_space<vmem>>, vector<8x8xf32>,
    %c0_45 = arith.constant 0 : index
    %c0_46 = arith.constant 0 : index
    %72 = vector.load %arg8[%c0_45, %c0_46] : memref<8x32xf32, #tpu.memory_space<vmem>>, vector<8x32xf32>
    %c0_47 = arith.constant 0 : index
    %c0_48 = arith.constant 0 : index
    %73 = vector.load %arg4[%c0_47, %c0_48] : memref<32x32xf32, #tpu.memory_space<vmem>>, vector<32x32xf32>
    %cst_49 = arith.constant dense<0.000000e+00> : vector<8x32xf32>
    %74 = tpu.matmul %72, %73, %cst_49 {dimension_numbers = #tpu.dot_dimension_numbers<[1], [0], [0], [1], [0, 0, 1, 1], [], []>, precision = #tpu.contract_precision<fp32>} : vector<8x32xf32>, vector<32x32xf32>, vector<8x32xf32> -> vector<8x32xf32>
    %c0_50 = arith.constant 0 : index
    %c0_51 = arith.constant 0 : index
    %75 = vector.load %arg5[%c0_50, %c0_51] : memref<1x32xf32, #tpu.memory_space<vmem>>, vector<1x32xf32>
    %76 = vector.broadcast %75 : vector<1x32xf32> to vector<8x32xf32>
    %77 = arith.addf %74, %76 : vector<8x32xf32>
    %c0_52 = arith.constant 0 : index
    %c0_53 = arith.constant 0 : index
    %c0_54 = arith.constant 0 : index
    %78 = vector.load %arg6[%c0_52, %c0_53, %c0_54] : memref<1x8x32xf32, #tpu.memory_space<vmem>>, vector<1x8x32xf32>
    %79 = vector.shape_cast %78 : vector<1x8x32xf32> to vector<8x32xf32>
    %80 = vector.shape_cast %77 : vector<8x32xf32> to vector<1x8x32xf32>
    tpu.vector_store %arg6[%c0_52, %c0_53, %c0_54], %80 {strides = array<i32>} : memref<1x8x32xf32, #tpu.memory_space<vmem>>, vector<1x8x32xf32>,
    return
  }
  func.func @transform_0(%arg0: i32) -> (i32, i32, i32) {
    %c0_i32 = arith.constant 0 : i32
    %c0_i32_0 = arith.constant 0 : i32
    %c0_i32_1 = arith.constant 0 : i32
    return %arg0, %c0_i32, %c0_i32_0 : i32, i32, i32
  }
  func.func @transform_1(%arg0: i32) -> (i32, i32) {
    %c0_i32 = arith.constant 0 : i32
    %c0_i32_0 = arith.constant 0 : i32
    %c0_i32_1 = arith.constant 0 : i32
    return %c0_i32, %c0_i32_0 : i32, i32
  }
  func.func @transform_2(%arg0: i32) -> (i32, i32) {
    %c0_i32 = arith.constant 0 : i32
    %c0_i32_0 = arith.constant 0 : i32
    %c0_i32_1 = arith.constant 0 : i32
    return %c0_i32, %c0_i32_0 : i32, i32
  }
  func.func @transform_3(%arg0: i32) -> (i32, i32) {
    %c0_i32 = arith.constant 0 : i32
    %c0_i32_0 = arith.constant 0 : i32
    %c0_i32_1 = arith.constant 0 : i32
    return %c0_i32, %c0_i32_0 : i32, i32
  }
  func.func @transform_4(%arg0: i32) -> (i32, i32) {
    %c0_i32 = arith.constant 0 : i32
    %c0_i32_0 = arith.constant 0 : i32
    %c0_i32_1 = arith.constant 0 : i32
    return %c0_i32, %c0_i32_0 : i32, i32
  }
  func.func @transform_5(%arg0: i32) -> (i32, i32, i32) {
    %c0_i32 = arith.constant 0 : i32
    %c0_i32_0 = arith.constant 0 : i32
    %c0_i32_1 = arith.constant 0 : i32
    return %arg0, %c0_i32, %c0_i32_0 : i32, i32, i32
  }
}

</mosaic_0001>

<llo_original>
// kernel: tpu_custom_call.1
$region0: #{tpu_custom_call.1}
  #allocation0 [shape = 'u32[]', space=smem, size = 0x4, offset = 0x4, fixed_abs, tag = 'smem constant byte address 0x4 - core index']
  #allocation1 [shape = 'u32[72,128]{1,0:T(1,128)}', space=vmem, size = 0x9000, scoped, tag = 'internal scratch']
  #allocation2 [shape = 'f32[8,96]{1,0:T(8,128)}', space=vmem, size = 0x1000, scoped, tag = 'scratch operand']
  #allocation3 [shape = 'f32[8,32]{1,0:T(8,128)}', space=vmem, size = 0x1000, scoped, tag = 'scratch operand']
  %s0 = inlined_call_operand.hbm [shape: f32[2,8,32], index: 0, kind: input, shape index: {}]
  %s1 = inlined_call_operand.hbm [shape: f32[32,96], index: 1, kind: input, shape index: {}]
  %s2 = inlined_call_operand.vmem [shape: f32[1,96], index: 2, kind: input, shape index: {}]
  %s3 = inlined_call_operand.hbm [shape: f32[32,32], index: 3, kind: input, shape index: {}]
  %s4 = inlined_call_operand.vmem [shape: f32[1,32], index: 4, kind: input, shape index: {}]
  %s5 = inlined_call_operand.hbm [shape: f32[2,8,32], index: 5, kind: output, shape index: {}]
  %s6 = sld [smem:[#allocation0]]
  $region65: #{tpu_custom_call.1} parent=0
    _
  %s8 = ssub.s32 1, %s6
  %s9 = scalar_select 0, %s8, %s6
  $region1: #{tpu_custom_call.1} parent=0
    #allocation4 [shape = 'u8[8192]{0}', space=vmem, size = 0x2000, scoped, tag = 'input window, operand 0']
    #allocation5 [shape = 's32[2]{0}', space=sflag, size = 0x8, scoped, tag = 'scoped memory for tpu_custom_call.1']
    #allocation6 [shape = 's32[2]{0}', space=sflag, size = 0x8, scoped, tag = 'scoped memory for tpu_custom_call.1']
    #allocation7 [shape = 'u8[16384]{0}', space=vmem, size = 0x4000, scoped, tag = 'input window, operand 1, single buffered']
    #allocation8 [shape = 's32[1]{0}', space=sflag, size = 0x4, scoped, tag = 'scoped memory for tpu_custom_call.1']
    #allocation9 [shape = 'u8[16384]{0}', space=vmem, size = 0x4000, scoped, tag = 'input window, operand 3, single buffered']
    #allocation10 [shape = 'u8[8192]{0}', space=vmem, size = 0x2000, scoped, tag = 'output window, operand 0']
    %10 = vsyncpa [#allocation5], 0
    %s11 = scalar_lea.sflag [#allocation5], 1
    %12 = vsyncpa %s11, 0
    %13 = vsyncpa [#allocation8], 0
    %14 = vsyncpa [#allocation6], 0
    %s15 = scalar_lea.sflag [#allocation6], 1
    %16 = vsyncpa %s15, 0
    loop: start=0, step=1, limit=4
    $region2: #{tpu_custom_call.1} parent=1 // loop_pre_header
      _
    $region3: #{tpu_custom_call.1} parent=1 // loop_header
      %s18 = sphi 0, %s22
      %p19 = scmp.ge.s32.totalorder %s18, 4
      %s28 = sphi 0, %s30
      %s31 = sphi 0, %s28
      %s32 = sphi 0, %s31
      %s48 = sphi 0, %s32
      %s52 = sphi 0, %s52
      %s54 = sphi 0, %s52
      %s55 = sphi 0, %s54
      %s69 = sphi 0, %s55
      %s73 = sphi 0, %s73
      %s75 = sphi 0, %s73
      %s76 = sphi 0, %s75
      %s90 = sphi 0, %s76
      %s94 = sphi 0, %s94
      %s96 = sphi 0, %s94
      %s97 = sphi 0, %s96
      %s111 = sphi 0, %s97
      %s115 = sphi 0, %s115
      %s117 = sphi 0, %s115
      %s118 = sphi 0, %s117
      %s132 = sphi 0, %s118
      %s138 = sphi 0, %s140
      %s141 = sphi 0, %s138
      %s142 = sphi 0, %s141
      %s158 = sphi 0, %s142
    $region4: #{tpu_custom_call.1} parent=1 // loop_header_branch
      %21 = sbr.rel (%p19) target = $region8
    $region5: #{tpu_custom_call.1} parent=1 // loop_body
      %s23 = ssub.s32 %s18, 1
      %s24 = ssub.s32 %s18, 2
      %s25 = sadd.s32 %s18, 1
      %s26 = ssub.s32 %s18, %s25
      %p27 = scmp.eq.s32.totalorder %s26, 0
      %s29 = sadd.s32 %s28, 1
      %s30 = scalar_select %p27, %s28, %s29
      %p33 = pneg %p27
      %p34 = scmp.eq.s32.totalorder %s18, 1
      %p35 = por %p33, %p34
      %p36 = scmp.ne.s32.totalorder %s28, %s31
      %p37 = scmp.eq.s32.totalorder %s18, 0
      %p38 = por %p36, %p37
      %p39 = scmp.ne.s32.totalorder %s28, %s31
      %p40 = scmp.eq.s32.totalorder %s23, 1
      %p41 = por %p39, %p40
      %p42 = scmp.ne.s32.totalorder %s31, %s32
      %p43 = scmp.eq.s32.totalorder %s23, 0
      %p44 = por %p42, %p43
      %p45 = scmp.ne.s32.totalorder %s31, %s32
      %p46 = scmp.eq.s32.totalorder %s24, 1
      %p47 = por %p45, %p46
      %p49 = scmp.ne.s32.totalorder %s32, %s48
      %p50 = scmp.eq.s32.totalorder %s24, 0
      %p51 = por %p49, %p50
      %s53 = sadd.s32 %s52, 1
      %p56 = scmp.eq.s32.totalorder %s18, 1
      %p57 = scmp.ne.s32.totalorder %s52, %s54
      %p58 = scmp.eq.s32.totalorder %s18, 0
      %p59 = por %p57, %p58
      %p60 = scmp.ne.s32.totalorder %s52, %s54
      %p61 = scmp.eq.s32.totalorder %s23, 1
      %p62 = por %p60, %p61
      %p63 = scmp.ne.s32.totalorder %s54, %s55
      %p64 = scmp.eq.s32.totalorder %s23, 0
      %p65 = por %p63, %p64
      %p66 = scmp.ne.s32.totalorder %s54, %s55
      %p67 = scmp.eq.s32.totalorder %s24, 1
      %p68 = por %p66, %p67
      %p70 = scmp.ne.s32.totalorder %s55, %s69
      %p71 = scmp.eq.s32.totalorder %s24, 0
      %p72 = por %p70, %p71
      %s74 = sadd.s32 %s73, 1
      %p77 = scmp.eq.s32.totalorder %s18, 1
      %p78 = scmp.ne.s32.totalorder %s73, %s75
      %p79 = scmp.eq.s32.totalorder %s18, 0
      %p80 = por %p78, %p79
      %p81 = scmp.ne.s32.totalorder %s73, %s75
      %p82 = scmp.eq.s32.totalorder %s23, 1
      %p83 = por %p81, %p82
      %p84 = scmp.ne.s32.totalorder %s75, %s76
      %p85 = scmp.eq.s32.totalorder %s23, 0
      %p86 = por %p84, %p85
      %p87 = scmp.ne.s32.totalorder %s75, %s76
      %p88 = scmp.eq.s32.totalorder %s24, 1
      %p89 = por %p87, %p88
      %p91 = scmp.ne.s32.totalorder %s76, %s90
      %p92 = scmp.eq.s32.totalorder %s24, 0
      %p93 = por %p91, %p92
      %s95 = sadd.s32 %s94, 1
      %p98 = scmp.eq.s32.totalorder %s18, 1
      %p99 = scmp.ne.s32.totalorder %s94, %s96
      %p100 = scmp.eq.s32.totalorder %s18, 0
      %p101 = por %p99, %p100
      %p102 = scmp.ne.s32.totalorder %s94, %s96
      %p103 = scmp.eq.s32.totalorder %s23, 1
      %p104 = por %p102, %p103
      %p105 = scmp.ne.s32.totalorder %s96, %s97
      %p106 = scmp.eq.s32.totalorder %s23, 0
      %p107 = por %p105, %p106
      %p108 = scmp.ne.s32.totalorder %s96, %s97
      %p109 = scmp.eq.s32.totalorder %s24, 1
      %p110 = por %p108, %p109
      %p112 = scmp.ne.s32.totalorder %s97, %s111
      %p113 = scmp.eq.s32.totalorder %s24, 0
      %p114 = por %p112, %p113
      %s116 = sadd.s32 %s115, 1
      %p119 = scmp.eq.s32.totalorder %s18, 1
      %p120 = scmp.ne.s32.totalorder %s115, %s117
      %p121 = scmp.eq.s32.totalorder %s18, 0
      %p122 = por %p120, %p121
      %p123 = scmp.ne.s32.totalorder %s115, %s117
      %p124 = scmp.eq.s32.totalorder %s23, 1
      %p125 = por %p123, %p124
      %p126 = scmp.ne.s32.totalorder %s117, %s118
      %p127 = scmp.eq.s32.totalorder %s23, 0
      %p128 = por %p126, %p127
      %p129 = scmp.ne.s32.totalorder %s117, %s118
      %p130 = scmp.eq.s32.totalorder %s24, 1
      %p131 = por %p129, %p130
      %p133 = scmp.ne.s32.totalorder %s118, %s132
      %p134 = scmp.eq.s32.totalorder %s24, 0
      %p135 = por %p133, %p134
      %s136 = ssub.s32 %s18, %s25
      %p137 = scmp.eq.s32.totalorder %s136, 0
      %s139 = sadd.s32 %s138, 1
      %s140 = scalar_select %p137, %s138, %s139
      %p143 = pneg %p137
      %p144 = scmp.eq.s32.totalorder %s18, 1
      %p145 = por %p143, %p144
      %p146 = scmp.ne.s32.totalorder %s138, %s141
      %p147 = scmp.eq.s32.totalorder %s18, 0
      %p148 = por %p146, %p147
      %p149 = scmp.ne.s32.totalorder %s138, %s141
      %p150 = scmp.eq.s32.totalorder %s23, 1
      %p151 = por %p149, %p150
      %p152 = scmp.ne.s32.totalorder %s141, %s142
      %p153 = scmp.eq.s32.totalorder %s23, 0
      %p154 = por %p152, %p153
      %p155 = scmp.ne.s32.totalorder %s141, %s142
      %p156 = scmp.eq.s32.totalorder %s24, 1
      %p157 = por %p155, %p156
      %p159 = scmp.ne.s32.totalorder %s142, %s158
      %p160 = scmp.eq.s32.totalorder %s24, 0
      %p161 = por %p159, %p160
      %p162 = scmp.le.s32.totalorder 1, %s18
      %p163 = scmp.lt.s32.totalorder %s18, 3
      %p164 = pnand %p162, %p163
      %p165 = pneg %p164
      // Predicated region
      $region9: #{tpu_custom_call.1} parent=5 // pred_check
        _
      $region10: #{tpu_custom_call.1} parent=5 // pred_check_branch
        %167 = sbr.rel (%p164) target = $region12
      $region11: #{tpu_custom_call.1} parent=5 // pred_region
        %s168 = ssub.s32 %s18, 1
        // Predicated region
        $region13: #{tpu_custom_call.1} parent=11 // pred_check
          %p169 = pneg %p65
        $region14: #{tpu_custom_call.1} parent=11 // pred_check_branch
          %171 = sbr.rel (%p169) target = $region16
        $region15: #{tpu_custom_call.1} parent=11 // pred_region
          %173 = vsyncadd [#allocation8], 0
          %s174 = sshll.u32 %s1, 4
          %s175 = int_to_ptr.hbm [resolvable:$true] %s174
          %s176 = sshll.u32 [#allocation7], 4
          %s177 = int_to_ptr.vmem [resolvable:$true] %s176
          %182 = dma.hbm_to_vmem [thread:$0]  %s175, 512, %s177, [#allocation8], 128, 128, 8
        $region16: #{tpu_custom_call.1} parent=11 // pred_fallthru
          _
        // Predicated region
        $region17: #{tpu_custom_call.1} parent=11 // pred_check
          %p183 = pneg %p86
        $region18: #{tpu_custom_call.1} parent=11 // pred_check_branch
          %185 = sbr.rel (%p183) target = $region20
        $region19: #{tpu_custom_call.1} parent=11 // pred_region
          _
        $region20: #{tpu_custom_call.1} parent=11 // pred_fallthru
          _
        // Predicated region
        $region21: #{tpu_custom_call.1} parent=11 // pred_check
          %p186 = pneg %p107
        $region22: #{tpu_custom_call.1} parent=11 // pred_check_branch
          %188 = sbr.rel (%p186) target = $region24
        $region23: #{tpu_custom_call.1} parent=11 // pred_region
          %190 = vsyncadd [#allocation8], 0
          %s191 = sshll.u32 %s3, 4
          %s192 = int_to_ptr.hbm [resolvable:$true] %s191
          %s193 = sshll.u32 [#allocation9], 4
          %s194 = int_to_ptr.vmem [resolvable:$true] %s193
          %199 = dma.hbm_to_vmem [thread:$0]  %s192, 512, %s194, [#allocation8], 128, 128, 8
        $region24: #{tpu_custom_call.1} parent=11 // pred_fallthru
          _
        // Predicated region
        $region25: #{tpu_custom_call.1} parent=11 // pred_check
          %p200 = pneg %p128
        $region26: #{tpu_custom_call.1} parent=11 // pred_check_branch
          %202 = sbr.rel (%p200) target = $region28
        $region27: #{tpu_custom_call.1} parent=11 // pred_region
          _
        $region28: #{tpu_custom_call.1} parent=11 // pred_fallthru
          _
      $region12: #{tpu_custom_call.1} parent=5 // pred_fallthru
        _
      %p203 = scmp.lt.s32.totalorder %s18, 2
      // Predicated region
      $region29: #{tpu_custom_call.1} parent=5 // pred_check
        %p204 = pneg %p203
      $region30: #{tpu_custom_call.1} parent=5 // pred_check_branch
        %206 = sbr.rel (%p204) target = $region32
      $region31: #{tpu_custom_call.1} parent=5 // pred_region
        // Predicated region
        $region33: #{tpu_custom_call.1} parent=31 // pred_check
          %p207 = pneg %p38
        $region34: #{tpu_custom_call.1} parent=31 // pred_check_branch
          %209 = sbr.rel (%p207) target = $region36
        $region35: #{tpu_custom_call.1} parent=31 // pred_region
          %s210 = sand.u32 %s28, 1
          %s211 = scalar_lea.sflag [#allocation5], %s210
          %s212 = sand.u32 %s28, 1
          %s213 = smul.addr %s212, 8
          %s214 = scalar_lea.vmem [#allocation4], %s213
          %216 = vsyncadd %s211, 0
          %s217 = smul.addr %s18, 8
          %s218 = scalar_lea.hbm %s0, %s217
          %s220 = sshll.u32 %s218, 4
          %s221 = int_to_ptr.hbm [resolvable:$true] %s220
          %s222 = sshll.u32 %s214, 4
          %s223 = int_to_ptr.vmem [resolvable:$true] %s222
          %225 = dma.hbm_to_vmem [thread:$0]  %s221, 128, %s223, %s211
        $region36: #{tpu_custom_call.1} parent=31 // pred_fallthru
          _
      $region32: #{tpu_custom_call.1} parent=5 // pred_fallthru
        _
      %p226 = scmp.le.s32.totalorder 1, %s18
      %p227 = scmp.lt.s32.totalorder %s18, 3
      %p228 = pnand %p226, %p227
      %p229 = pneg %p228
      // Predicated region
      $region37: #{tpu_custom_call.1} parent=5 // pred_check
        _
      $region38: #{tpu_custom_call.1} parent=5 // pred_check_branch
        %231 = sbr.rel (%p228) target = $region40
      $region39: #{tpu_custom_call.1} parent=5 // pred_region
        %s232 = ssub.s32 %s18, 1
        %s233 = sand.u32 %s31, 1
        %s234 = scalar_lea.sflag [#allocation5], %s233
        %s235 = sand.u32 %s31, 1
        %s236 = smul.addr %s235, 8
        %s237 = scalar_lea.vmem [#allocation4], %s236
        // Predicated region
        $region41: #{tpu_custom_call.1} parent=39 // pred_check
          %p238 = pneg %p44
        $region42: #{tpu_custom_call.1} parent=39 // pred_check_branch
          %240 = sbr.rel (%p238) target = $region44
        $region43: #{tpu_custom_call.1} parent=39 // pred_region
          %242 = dma.done %s234, 128
        $region44: #{tpu_custom_call.1} parent=39 // pred_fallthru
          _
        // Predicated region
        $region45: #{tpu_custom_call.1} parent=39 // pred_check
          %p243 = pneg %p65
        $region46: #{tpu_custom_call.1} parent=39 // pred_check_branch
          %245 = sbr.rel (%p243) target = $region48
        $region47: #{tpu_custom_call.1} parent=39 // pred_region
          %247 = dma.done [#allocation8], 512
        $region48: #{tpu_custom_call.1} parent=39 // pred_fallthru
          _
        // Predicated region
        $region49: #{tpu_custom_call.1} parent=39 // pred_check
          %p248 = pneg %p107
        $region50: #{tpu_custom_call.1} parent=39 // pred_check_branch
          %250 = sbr.rel (%p248) target = $region52
        $region51: #{tpu_custom_call.1} parent=39 // pred_region
          %252 = dma.done [#allocation8], 512
        $region52: #{tpu_custom_call.1} parent=39 // pred_fallthru
          _
        %s253 = sand.u32 %s31, 1
        %s254 = scalar_lea.sflag [#allocation5], %s253
        %s255 = sand.u32 %s31, 1
        %s256 = smul.addr %s255, 8
        %s257 = scalar_lea.vmem [#allocation4], %s256
        %p258 = pneg %p44
        %p259 = pneg %p41
        %p260 = pneg %p65
        %p261 = pneg %p62
        %p262 = pneg %p86
        %p263 = pneg %p83
        %p264 = pneg %p107
        %p265 = pneg %p104
        %p266 = pneg %p128
        %p267 = pneg %p125
        %p268 = pneg %p154
        %p269 = pneg %p151
        %s270 = sand.u32 %s141, 1
        %s271 = scalar_lea.sflag [#allocation6], %s270
        %s272 = sand.u32 %s141, 1
        %s273 = smul.addr %s272, 8
        %s274 = scalar_lea.vmem [#allocation10], %s273
        %v275 = vld [vmem:[%s237] sm:$0xff]
        %v276 = vld [vmem:[#allocation7] sm:$0xff]
        %v277 = vld [vmem:[#allocation7 + $0x8] sm:$0xff]
        %v278 = vld [vmem:[#allocation7 + $0x10] sm:$0xff]
        %v279 = vld [vmem:[#allocation7 + $0x18] sm:$0xff]
        %v280 = vld [vmem:[%s2] sm:$0x1]
        %v282 = vperm.slane %v280, 0
        %vm284 = vcmask 261120
        %v286 = vsel %vm284, %v275, 0
        %288 = vmatpush.msra.mxu0 0.0
        %289 = vmatpush.msra.mxu0 0.0
        %290 = vmatpush.msra.mxu0 0.0
        %291 = vmatpush.msra.mxu0 0.0
        %292 = vmatpush.msra.mxu0 0.0
        %293 = vmatpush.msra.mxu0 0.0
        %294 = vmatpush.msra.mxu0 0.0
        %295 = vmatpush.msra.mxu0 0.0
        %296 = vmatpush.msra.mxu0 0.0
        %297 = vmatpush.msra.mxu0 0.0
        %298 = vmatpush.msra.mxu0 0.0
        %299 = vmatpush.msra.mxu0 0.0
        %v300 = vand.u32 %v279, 4294901760
        %301 = vmatpush.msra.mxu0 %v300
        %v302 = vand.u32 %v278, 4294901760
        %303 = vmatpush.msra.mxu0 %v302
        %v304 = vand.u32 %v277, 4294901760
        %305 = vmatpush.msra.mxu0 %v304
        %v306 = vand.u32 %v276, 4294901760
        %307 = vmatpush.msra.mxu0 %v306
        %v308 = vand.u32 %v286, 4294901760
        %v309 = vsub.f32 %v286, %v308
        %v310 = vand.u32 %v309, 4294901760
        %v311 = vsub.f32 %v309, %v310
        %v312 = vand.u32 %v311, 4294901760
        %313 = vmatmul.f32.gmra.mxu0 %v312
        %v314 = vpop.f32.mrf.mxu0
        %v315 = vadd.f32 %v282, %v314
        %316 = vdwg.mxu0
        %317 = vmatpush.msra.mxu0 0.0
        %318 = vmatpush.msra.mxu0 0.0
        %319 = vmatpush.msra.mxu0 0.0
        %320 = vmatpush.msra.mxu0 0.0
        %321 = vmatpush.msra.mxu0 0.0
        %322 = vmatpush.msra.mxu0 0.0
        %323 = vmatpush.msra.mxu0 0.0
        %324 = vmatpush.msra.mxu0 0.0
        %325 = vmatpush.msra.mxu0 0.0
        %326 = vmatpush.msra.mxu0 0.0
        %327 = vmatpush.msra.mxu0 0.0
        %328 = vmatpush.msra.mxu0 0.0
        %v329 = vand.u32 %v279, 4294901760
        %v330 = vsub.f32 %v279, %v329
        %v331 = vand.u32 %v330, 4294901760
        %v332 = vsub.f32 %v330, %v331
        %v333 = vand.u32 %v332, 4294901760
        %334 = vmatpush.msra.mxu0 %v333
        %v335 = vand.u32 %v278, 4294901760
        %v336 = vsub.f32 %v278, %v335
        %v337 = vand.u32 %v336, 4294901760
        %v338 = vsub.f32 %v336, %v337
        %v339 = vand.u32 %v338, 4294901760
        %340 = vmatpush.msra.mxu0 %v339
        %v341 = vand.u32 %v277, 4294901760
        %v342 = vsub.f32 %v277, %v341
        %v343 = vand.u32 %v342, 4294901760
        %v344 = vsub.f32 %v342, %v343
        %v345 = vand.u32 %v344, 4294901760
        %346 = vmatpush.msra.mxu0 %v345
        %v347 = vand.u32 %v276, 4294901760
        %v348 = vsub.f32 %v276, %v347
        %v349 = vand.u32 %v348, 4294901760
        %v350 = vsub.f32 %v348, %v349
        %v351 = vand.u32 %v350, 4294901760
        %352 = vmatpush.msra.mxu0 %v351
        %v353 = vand.u32 %v286, 4294901760
        %354 = vmatmul.f32.gmra.mxu0 %v353
        %v355 = vpop.f32.mrf.mxu0
        %v356 = vadd.f32 %v315, %v355
        %357 = vdwg.mxu0
        %358 = vmatpush.msra.mxu0 0.0
        %359 = vmatpush.msra.mxu0 0.0
        %360 = vmatpush.msra.mxu0 0.0
        %361 = vmatpush.msra.mxu0 0.0
        %362 = vmatpush.msra.mxu0 0.0
        %363 = vmatpush.msra.mxu0 0.0
        %364 = vmatpush.msra.mxu0 0.0
        %365 = vmatpush.msra.mxu0 0.0
        %366 = vmatpush.msra.mxu0 0.0
        %367 = vmatpush.msra.mxu0 0.0
        %368 = vmatpush.msra.mxu0 0.0
        %369 = vmatpush.msra.mxu0 0.0
        %v370 = vand.u32 %v279, 4294901760
        %v371 = vsub.f32 %v279, %v370
        %372 = vmatpush.msra.mxu0 %v371
        %v373 = vand.u32 %v278, 4294901760
        %v374 = vsub.f32 %v278, %v373
        %375 = vmatpush.msra.mxu0 %v374
        %v376 = vand.u32 %v277, 4294901760
        %v377 = vsub.f32 %v277, %v376
        %378 = vmatpush.msra.mxu0 %v377
        %v379 = vand.u32 %v276, 4294901760
        %v380 = vsub.f32 %v276, %v379
        %381 = vmatpush.msra.mxu0 %v380
        %v382 = vand.u32 %v286, 4294901760
        %v383 = vsub.f32 %v286, %v382
        %384 = vmatmul.f32.gmra.mxu0 %v383
        %v385 = vpop.f32.mrf.mxu0
        %v386 = vadd.f32 %v356, %v385
        %387 = vdwg.mxu0
        %388 = vmatpush.msra.mxu0 0.0
        %389 = vmatpush.msra.mxu0 0.0
        %390 = vmatpush.msra.mxu0 0.0
        %391 = vmatpush.msra.mxu0 0.0
        %392 = vmatpush.msra.mxu0 0.0
        %393 = vmatpush.msra.mxu0 0.0
        %394 = vmatpush.msra.mxu0 0.0
        %395 = vmatpush.msra.mxu0 0.0
        %396 = vmatpush.msra.mxu0 0.0
        %397 = vmatpush.msra.mxu0 0.0
        %398 = vmatpush.msra.mxu0 0.0
        %399 = vmatpush.msra.mxu0 0.0
        %v400 = vand.u32 %v279, 4294901760
        %401 = vmatpush.msra.mxu0 %v400
        %v402 = vand.u32 %v278, 4294901760
        %403 = vmatpush.msra.mxu0 %v402
        %v404 = vand.u32 %v277, 4294901760
        %405 = vmatpush.msra.mxu0 %v404
        %v406 = vand.u32 %v276, 4294901760
        %407 = vmatpush.msra.mxu0 %v406
        %v408 = vand.u32 %v286, 4294901760
        %v409 = vsub.f32 %v286, %v408
        %v410 = vand.u32 %v409, 4294901760
        %411 = vmatmul.f32.gmra.mxu0 %v410
        %v412 = vpop.f32.mrf.mxu0
        %v413 = vadd.f32 %v386, %v412
        %414 = vdwg.mxu0
        %415 = vmatpush.msra.mxu0 0.0
        %416 = vmatpush.msra.mxu0 0.0
        %417 = vmatpush.msra.mxu0 0.0
        %418 = vmatpush.msra.mxu0 0.0
        %419 = vmatpush.msra.mxu0 0.0
        %420 = vmatpush.msra.mxu0 0.0
        %421 = vmatpush.msra.mxu0 0.0
        %422 = vmatpush.msra.mxu0 0.0
        %423 = vmatpush.msra.mxu0 0.0
        %424 = vmatpush.msra.mxu0 0.0
        %425 = vmatpush.msra.mxu0 0.0
        %426 = vmatpush.msra.mxu0 0.0
        %v427 = vand.u32 %v279, 4294901760
        %v428 = vsub.f32 %v279, %v427
        %v429 = vand.u32 %v428, 4294901760
        %430 = vmatpush.msra.mxu0 %v429
        %v431 = vand.u32 %v278, 4294901760
        %v432 = vsub.f32 %v278, %v431
        %v433 = vand.u32 %v432, 4294901760
        %434 = vmatpush.msra.mxu0 %v433
        %v435 = vand.u32 %v277, 4294901760
        %v436 = vsub.f32 %v277, %v435
        %v437 = vand.u32 %v436, 4294901760
        %438 = vmatpush.msra.mxu0 %v437
        %v439 = vand.u32 %v276, 4294901760
        %v440 = vsub.f32 %v276, %v439
        %v441 = vand.u32 %v440, 4294901760
        %442 = vmatpush.msra.mxu0 %v441
        %v443 = vand.u32 %v286, 4294901760
        %444 = vmatmul.f32.gmra.mxu0 %v443
        %v445 = vpop.f32.mrf.mxu0
        %v446 = vadd.f32 %v413, %v445
        %447 = vdwg.mxu0
        %448 = vmatpush.msra.mxu0 0.0
        %449 = vmatpush.msra.mxu0 0.0
        %450 = vmatpush.msra.mxu0 0.0
        %451 = vmatpush.msra.mxu0 0.0
        %452 = vmatpush.msra.mxu0 0.0
        %453 = vmatpush.msra.mxu0 0.0
        %454 = vmatpush.msra.mxu0 0.0
        %455 = vmatpush.msra.mxu0 0.0
        %456 = vmatpush.msra.mxu0 0.0
        %457 = vmatpush.msra.mxu0 0.0
        %458 = vmatpush.msra.mxu0 0.0
        %459 = vmatpush.msra.mxu0 0.0
        %v460 = vand.u32 %v279, 4294901760
        %461 = vmatpush.msra.mxu0 %v460
        %v462 = vand.u32 %v278, 4294901760
        %463 = vmatpush.msra.mxu0 %v462
        %v464 = vand.u32 %v277, 4294901760
        %465 = vmatpush.msra.mxu0 %v464
        %v466 = vand.u32 %v276, 4294901760
        %467 = vmatpush.msra.mxu0 %v466
        %v468 = vand.u32 %v286, 4294901760
        %469 = vmatmul.f32.gmra.mxu0 %v468
        %v470 = vpop.f32.mrf.mxu0
        %v471 = vadd.f32 %v446, %v470
        %472 = vdwg.mxu0
        %vm473 = vcmask 785408
        %474 = vst.msk [vmem:[#allocation2] sm:$0xff] %vm473, %v471
        %v475 = vld [vmem:[#allocation2] sm:$0xff]
        %477 = vrot.lane.b32.xlu0 %v475, 96
        %v478 = vpop.permute.xlu0 %477
        %vm479 = vcmask 64512
        %v480 = vsel %vm479, %v475, 0
        %v482 = vsel %vm479, %v478, 0
        %484 = vmatpush.xpose.msra.mxu0 0.0
        %485 = vmatpush.xpose.msra.mxu0 0.0
        %486 = vmatpush.xpose.msra.mxu0 0.0
        %487 = vmatpush.xpose.msra.mxu0 0.0
        %488 = vmatpush.xpose.msra.mxu0 0.0
        %489 = vmatpush.xpose.msra.mxu0 0.0
        %490 = vmatpush.xpose.msra.mxu0 0.0
        %491 = vmatpush.xpose.msra.mxu0 0.0
        %492 = vmatpush.xpose.msra.mxu0 0.0
        %493 = vmatpush.xpose.msra.mxu0 0.0
        %494 = vmatpush.xpose.msra.mxu0 0.0
        %495 = vmatpush.xpose.msra.mxu0 0.0
        %496 = vmatpush.xpose.msra.mxu0 0.0
        %497 = vmatpush.xpose.msra.mxu0 0.0
        %498 = vmatpush.xpose.msra.mxu0 0.0
        %v499 = vand.u32 %v482, 4294901760
        %500 = vmatpush.xpose.msra.mxu0 %v499
        %v501 = vand.u32 %v480, 4294901760
        %v502 = vsub.f32 %v480, %v501
        %v503 = vand.u32 %v502, 4294901760
        %v504 = vsub.f32 %v502, %v503
        %v505 = vand.u32 %v504, 4294901760
        %506 = vmatmul.f32.gmra.mxu0 %v505
        %v507 = vpop.f32.mrf.mxu0
        %v508 = vadd.f32 0.0, %v507
        %509 = vdwg.mxu0
        %510 = vmatpush.xpose.msra.mxu0 0.0
        %511 = vmatpush.xpose.msra.mxu0 0.0
        %512 = vmatpush.xpose.msra.mxu0 0.0
        %513 = vmatpush.xpose.msra.mxu0 0.0
        %514 = vmatpush.xpose.msra.mxu0 0.0
        %515 = vmatpush.xpose.msra.mxu0 0.0
        %516 = vmatpush.xpose.msra.mxu0 0.0
        %517 = vmatpush.xpose.msra.mxu0 0.0
        %518 = vmatpush.xpose.msra.mxu0 0.0
        %519 = vmatpush.xpose.msra.mxu0 0.0
        %520 = vmatpush.xpose.msra.mxu0 0.0
        %521 = vmatpush.xpose.msra.mxu0 0.0
        %522 = vmatpush.xpose.msra.mxu0 0.0
        %523 = vmatpush.xpose.msra.mxu0 0.0
        %524 = vmatpush.xpose.msra.mxu0 0.0
        %v525 = vand.u32 %v482, 4294901760
        %v526 = vsub.f32 %v482, %v525
        %v527 = vand.u32 %v526, 4294901760
        %v528 = vsub.f32 %v526, %v527
        %v529 = vand.u32 %v528, 4294901760
        %530 = vmatpush.xpose.msra.mxu0 %v529
        %v531 = vand.u32 %v480, 4294901760
        %532 = vmatmul.f32.gmra.mxu0 %v531
        %v533 = vpop.f32.mrf.mxu0
        %v534 = vadd.f32 %v508, %v533
        %535 = vdwg.mxu0
        %536 = vmatpush.xpose.msra.mxu0 0.0
        %537 = vmatpush.xpose.msra.mxu0 0.0
        %538 = vmatpush.xpose.msra.mxu0 0.0
        %539 = vmatpush.xpose.msra.mxu0 0.0
        %540 = vmatpush.xpose.msra.mxu0 0.0
        %541 = vmatpush.xpose.msra.mxu0 0.0
        %542 = vmatpush.xpose.msra.mxu0 0.0
        %543 = vmatpush.xpose.msra.mxu0 0.0
        %544 = vmatpush.xpose.msra.mxu0 0.0
        %545 = vmatpush.xpose.msra.mxu0 0.0
        %546 = vmatpush.xpose.msra.mxu0 0.0
        %547 = vmatpush.xpose.msra.mxu0 0.0
        %548 = vmatpush.xpose.msra.mxu0 0.0
        %549 = vmatpush.xpose.msra.mxu0 0.0
        %550 = vmatpush.xpose.msra.mxu0 0.0
        %v551 = vand.u32 %v482, 4294901760
        %v552 = vsub.f32 %v482, %v551
        %553 = vmatpush.xpose.msra.mxu0 %v552
        %v554 = vand.u32 %v480, 4294901760
        %v555 = vsub.f32 %v480, %v554
        %556 = vmatmul.f32.gmra.mxu0 %v555
        %v557 = vpop.f32.mrf.mxu0
        %v558 = vadd.f32 %v534, %v557
        %559 = vdwg.mxu0
        %560 = vmatpush.xpose.msra.mxu0 0.0
        %561 = vmatpush.xpose.msra.mxu0 0.0
        %562 = vmatpush.xpose.msra.mxu0 0.0
        %563 = vmatpush.xpose.msra.mxu0 0.0
        %564 = vmatpush.xpose.msra.mxu0 0.0
        %565 = vmatpush.xpose.msra.mxu0 0.0
        %566 = vmatpush.xpose.msra.mxu0 0.0
        %567 = vmatpush.xpose.msra.mxu0 0.0
        %568 = vmatpush.xpose.msra.mxu0 0.0
        %569 = vmatpush.xpose.msra.mxu0 0.0
        %570 = vmatpush.xpose.msra.mxu0 0.0
        %571 = vmatpush.xpose.msra.mxu0 0.0
        %572 = vmatpush.xpose.msra.mxu0 0.0
        %573 = vmatpush.xpose.msra.mxu0 0.0
        %574 = vmatpush.xpose.msra.mxu0 0.0
        %v575 = vand.u32 %v482, 4294901760
        %576 = vmatpush.xpose.msra.mxu0 %v575
        %v577 = vand.u32 %v480, 4294901760
        %v578 = vsub.f32 %v480, %v577
        %v579 = vand.u32 %v578, 4294901760
        %580 = vmatmul.f32.gmra.mxu0 %v579
        %v581 = vpop.f32.mrf.mxu0
        %v582 = vadd.f32 %v558, %v581
        %583 = vdwg.mxu0
        %584 = vmatpush.xpose.msra.mxu0 0.0
        %585 = vmatpush.xpose.msra.mxu0 0.0
        %586 = vmatpush.xpose.msra.mxu0 0.0
        %587 = vmatpush.xpose.msra.mxu0 0.0
        %588 = vmatpush.xpose.msra.mxu0 0.0
        %589 = vmatpush.xpose.msra.mxu0 0.0
        %590 = vmatpush.xpose.msra.mxu0 0.0
        %591 = vmatpush.xpose.msra.mxu0 0.0
        %592 = vmatpush.xpose.msra.mxu0 0.0
        %593 = vmatpush.xpose.msra.mxu0 0.0
        %594 = vmatpush.xpose.msra.mxu0 0.0
        %595 = vmatpush.xpose.msra.mxu0 0.0
        %596 = vmatpush.xpose.msra.mxu0 0.0
        %597 = vmatpush.xpose.msra.mxu0 0.0
        %598 = vmatpush.xpose.msra.mxu0 0.0
        %v599 = vand.u32 %v482, 4294901760
        %v600 = vsub.f32 %v482, %v599
        %v601 = vand.u32 %v600, 4294901760
        %602 = vmatpush.xpose.msra.mxu0 %v601
        %v603 = vand.u32 %v480, 4294901760
        %604 = vmatmul.f32.gmra.mxu0 %v603
        %v605 = vpop.f32.mrf.mxu0
        %v606 = vadd.f32 %v582, %v605
        %607 = vdwg.mxu0
        %608 = vmatpush.xpose.msra.mxu0 0.0
        %609 = vmatpush.xpose.msra.mxu0 0.0
        %610 = vmatpush.xpose.msra.mxu0 0.0
        %611 = vmatpush.xpose.msra.mxu0 0.0
        %612 = vmatpush.xpose.msra.mxu0 0.0
        %613 = vmatpush.xpose.msra.mxu0 0.0
        %614 = vmatpush.xpose.msra.mxu0 0.0
        %615 = vmatpush.xpose.msra.mxu0 0.0
        %616 = vmatpush.xpose.msra.mxu0 0.0
        %617 = vmatpush.xpose.msra.mxu0 0.0
        %618 = vmatpush.xpose.msra.mxu0 0.0
        %619 = vmatpush.xpose.msra.mxu0 0.0
        %620 = vmatpush.xpose.msra.mxu0 0.0
        %621 = vmatpush.xpose.msra.mxu0 0.0
        %622 = vmatpush.xpose.msra.mxu0 0.0
        %v623 = vand.u32 %v482, 4294901760
        %624 = vmatpush.xpose.msra.mxu0 %v623
        %v625 = vand.u32 %v480, 4294901760
        %626 = vmatmul.f32.gmra.mxu0 %v625
        %v627 = vpop.f32.mrf.mxu0
        %v628 = vadd.f32 %v606, %v627
        %629 = vdwg.mxu0
        %v630 = vsel %vm479, %v628, -inf
        %631 = vmax.xlane.f32.xlu0 %v630
        %v632 = vpop.xlane.xlu0 %631
        %v633 = vsub.f32 %v628, %v632
        %v634 = vmul.f32 %v633, 1.442695
        %v635 = vpow.pop %v634
        %v636 = vsel %vm479, %v635, 0.0
        %637 = vadd.xlane.f32.xlu0 %v636
        %v638 = vpop.xlane.xlu0 %637
        %v639 = vrcp.pop %v638
        %v640 = vmul.f32 %v638, %v639
        %v641 = vsub.f32 1.0, %v640
        %v642 = vmul.f32 %v639, %v641
        %v643 = vadd.f32 %v639, %v642
        %vm644 = vweird.f32 %v638
        %vm645 = vweird.f32 %v639
        %vm646 = vmor %vm644, %vm645
        %v647 = vsel %vm646, %v639, %v643
        %v648 = vand.u32 2147483647, %v638
        %vm649 = vcmp.eq.f32.partialorder %v648, 8.507059e+37
        %v650 = vand.u32 %v638, 2147483648
        %v651 = vor.u32 1.1754944e-38, %v650
        %v652 = vsel %vm649, %v651, %v647
        %653 = vrot.lane.b32.xlu0 %v475, 64
        %v654 = vpop.permute.xlu0 %653
        %v657 = vsel %vm479, %v635, 0
        %659 = vmatpush.msra.mxu0 0.0
        %660 = vmatpush.msra.mxu0 0.0
        %661 = vmatpush.msra.mxu0 0.0
        %662 = vmatpush.msra.mxu0 0.0
        %663 = vmatpush.msra.mxu0 0.0
        %664 = vmatpush.msra.mxu0 0.0
        %665 = vmatpush.msra.mxu0 0.0
        %666 = vmatpush.msra.mxu0 0.0
        %667 = vmatpush.msra.mxu0 0.0
        %668 = vmatpush.msra.mxu0 0.0
        %669 = vmatpush.msra.mxu0 0.0
        %670 = vmatpush.msra.mxu0 0.0
        %671 = vmatpush.msra.mxu0 0.0
        %672 = vmatpush.msra.mxu0 0.0
        %673 = vmatpush.msra.mxu0 0.0
        %v674 = vand.u32 %v654, 4294901760
        %675 = vmatpush.msra.mxu0 %v674
        %v676 = vand.u32 %v657, 4294901760
        %v677 = vsub.f32 %v657, %v676
        %v678 = vand.u32 %v677, 4294901760
        %v679 = vsub.f32 %v677, %v678
        %v680 = vand.u32 %v679, 4294901760
        %681 = vmatmul.f32.gmra.mxu0 %v680
        %v682 = vpop.f32.mrf.mxu0
        %v683 = vadd.f32 0.0, %v682
        %684 = vdwg.mxu0
        %685 = vmatpush.msra.mxu0 0.0
        %686 = vmatpush.msra.mxu0 0.0
        %687 = vmatpush.msra.mxu0 0.0
        %688 = vmatpush.msra.mxu0 0.0
        %689 = vmatpush.msra.mxu0 0.0
        %690 = vmatpush.msra.mxu0 0.0
        %691 = vmatpush.msra.mxu0 0.0
        %692 = vmatpush.msra.mxu0 0.0
        %693 = vmatpush.msra.mxu0 0.0
        %694 = vmatpush.msra.mxu0 0.0
        %695 = vmatpush.msra.mxu0 0.0
        %696 = vmatpush.msra.mxu0 0.0
        %697 = vmatpush.msra.mxu0 0.0
        %698 = vmatpush.msra.mxu0 0.0
        %699 = vmatpush.msra.mxu0 0.0
        %v700 = vand.u32 %v654, 4294901760
        %v701 = vsub.f32 %v654, %v700
        %v702 = vand.u32 %v701, 4294901760
        %v703 = vsub.f32 %v701, %v702
        %v704 = vand.u32 %v703, 4294901760
        %705 = vmatpush.msra.mxu0 %v704
        %v706 = vand.u32 %v657, 4294901760
        %707 = vmatmul.f32.gmra.mxu0 %v706
        %v708 = vpop.f32.mrf.mxu0
        %v709 = vadd.f32 %v683, %v708
        %710 = vdwg.mxu0
        %711 = vmatpush.msra.mxu0 0.0
        %712 = vmatpush.msra.mxu0 0.0
        %713 = vmatpush.msra.mxu0 0.0
        %714 = vmatpush.msra.mxu0 0.0
        %715 = vmatpush.msra.mxu0 0.0
        %716 = vmatpush.msra.mxu0 0.0
        %717 = vmatpush.msra.mxu0 0.0
        %718 = vmatpush.msra.mxu0 0.0
        %719 = vmatpush.msra.mxu0 0.0
        %720 = vmatpush.msra.mxu0 0.0
        %721 = vmatpush.msra.mxu0 0.0
        %722 = vmatpush.msra.mxu0 0.0
        %723 = vmatpush.msra.mxu0 0.0
        %724 = vmatpush.msra.mxu0 0.0
        %725 = vmatpush.msra.mxu0 0.0
        %v726 = vand.u32 %v654, 4294901760
        %v727 = vsub.f32 %v654, %v726
        %728 = vmatpush.msra.mxu0 %v727
        %v729 = vand.u32 %v657, 4294901760
        %v730 = vsub.f32 %v657, %v729
        %731 = vmatmul.f32.gmra.mxu0 %v730
        %v732 = vpop.f32.mrf.mxu0
        %v733 = vadd.f32 %v709, %v732
        %734 = vdwg.mxu0
        %735 = vmatpush.msra.mxu0 0.0
        %736 = vmatpush.msra.mxu0 0.0
        %737 = vmatpush.msra.mxu0 0.0
        %738 = vmatpush.msra.mxu0 0.0
        %739 = vmatpush.msra.mxu0 0.0
        %740 = vmatpush.msra.mxu0 0.0
        %741 = vmatpush.msra.mxu0 0.0
        %742 = vmatpush.msra.mxu0 0.0
        %743 = vmatpush.msra.mxu0 0.0
        %744 = vmatpush.msra.mxu0 0.0
        %745 = vmatpush.msra.mxu0 0.0
        %746 = vmatpush.msra.mxu0 0.0
        %747 = vmatpush.msra.mxu0 0.0
        %748 = vmatpush.msra.mxu0 0.0
        %749 = vmatpush.msra.mxu0 0.0
        %v750 = vand.u32 %v654, 4294901760
        %751 = vmatpush.msra.mxu0 %v750
        %v752 = vand.u32 %v657, 4294901760
        %v753 = vsub.f32 %v657, %v752
        %v754 = vand.u32 %v753, 4294901760
        %755 = vmatmul.f32.gmra.mxu0 %v754
        %v756 = vpop.f32.mrf.mxu0
        %v757 = vadd.f32 %v733, %v756
        %758 = vdwg.mxu0
        %759 = vmatpush.msra.mxu0 0.0
        %760 = vmatpush.msra.mxu0 0.0
        %761 = vmatpush.msra.mxu0 0.0
        %762 = vmatpush.msra.mxu0 0.0
        %763 = vmatpush.msra.mxu0 0.0
        %764 = vmatpush.msra.mxu0 0.0
        %765 = vmatpush.msra.mxu0 0.0
        %766 = vmatpush.msra.mxu0 0.0
        %767 = vmatpush.msra.mxu0 0.0
        %768 = vmatpush.msra.mxu0 0.0
        %769 = vmatpush.msra.mxu0 0.0
        %770 = vmatpush.msra.mxu0 0.0
        %771 = vmatpush.msra.mxu0 0.0
        %772 = vmatpush.msra.mxu0 0.0
        %773 = vmatpush.msra.mxu0 0.0
        %v774 = vand.u32 %v654, 4294901760
        %v775 = vsub.f32 %v654, %v774
        %v776 = vand.u32 %v775, 4294901760
        %777 = vmatpush.msra.mxu0 %v776
        %v778 = vand.u32 %v657, 4294901760
        %779 = vmatmul.f32.gmra.mxu0 %v778
        %v780 = vpop.f32.mrf.mxu0
        %v781 = vadd.f32 %v757, %v780
        %782 = vdwg.mxu0
        %783 = vmatpush.msra.mxu0 0.0
        %784 = vmatpush.msra.mxu0 0.0
        %785 = vmatpush.msra.mxu0 0.0
        %786 = vmatpush.msra.mxu0 0.0
        %787 = vmatpush.msra.mxu0 0.0
        %788 = vmatpush.msra.mxu0 0.0
        %789 = vmatpush.msra.mxu0 0.0
        %790 = vmatpush.msra.mxu0 0.0
        %791 = vmatpush.msra.mxu0 0.0
        %792 = vmatpush.msra.mxu0 0.0
        %793 = vmatpush.msra.mxu0 0.0
        %794 = vmatpush.msra.mxu0 0.0
        %795 = vmatpush.msra.mxu0 0.0
        %796 = vmatpush.msra.mxu0 0.0
        %797 = vmatpush.msra.mxu0 0.0
        %v798 = vand.u32 %v654, 4294901760
        %799 = vmatpush.msra.mxu0 %v798
        %v800 = vand.u32 %v657, 4294901760
        %801 = vmatmul.f32.gmra.mxu0 %v800
        %v802 = vpop.f32.mrf.mxu0
        %v803 = vadd.f32 %v781, %v802
        %804 = vdwg.mxu0
        %v805 = vmul.f32 %v803, %v652
        %806 = vst.msk [vmem:[#allocation3] sm:$0xff] %vm479, %v805
        %v807 = vld [vmem:[#allocation2] sm:$0xff]
        %809 = vrot.lane.b32.xlu0 %v807, 120
        %v810 = vpop.permute.xlu0 %809
        %811 = vrot.lane.b32.xlu0 %v807, 88
        %v812 = vpop.permute.xlu0 %811
        %v813 = vsel %vm479, %v810, 0
        %v815 = vsel %vm479, %v812, 0
        %817 = vmatpush.xpose.msra.mxu0 0.0
        %818 = vmatpush.xpose.msra.mxu0 0.0
        %819 = vmatpush.xpose.msra.mxu0 0.0
        %820 = vmatpush.xpose.msra.mxu0 0.0
        %821 = vmatpush.xpose.msra.mxu0 0.0
        %822 = vmatpush.xpose.msra.mxu0 0.0
        %823 = vmatpush.xpose.msra.mxu0 0.0
        %824 = vmatpush.xpose.msra.mxu0 0.0
        %825 = vmatpush.xpose.msra.mxu0 0.0
        %826 = vmatpush.xpose.msra.mxu0 0.0
        %827 = vmatpush.xpose.msra.mxu0 0.0
        %828 = vmatpush.xpose.msra.mxu0 0.0
        %829 = vmatpush.xpose.msra.mxu0 0.0
        %830 = vmatpush.xpose.msra.mxu0 0.0
        %831 = vmatpush.xpose.msra.mxu0 0.0
        %v832 = vand.u32 %v815, 4294901760
        %833 = vmatpush.xpose.msra.mxu0 %v832
        %v834 = vand.u32 %v813, 4294901760
        %v835 = vsub.f32 %v813, %v834
        %v836 = vand.u32 %v835, 4294901760
        %v837 = vsub.f32 %v835, %v836
        %v838 = vand.u32 %v837, 4294901760
        %839 = vmatmul.f32.gmra.mxu0 %v838
        %v840 = vpop.f32.mrf.mxu0
        %v841 = vadd.f32 0.0, %v840
        %842 = vdwg.mxu0
        %843 = vmatpush.xpose.msra.mxu0 0.0
        %844 = vmatpush.xpose.msra.mxu0 0.0
        %845 = vmatpush.xpose.msra.mxu0 0.0
        %846 = vmatpush.xpose.msra.mxu0 0.0
        %847 = vmatpush.xpose.msra.mxu0 0.0
        %848 = vmatpush.xpose.msra.mxu0 0.0
        %849 = vmatpush.xpose.msra.mxu0 0.0
        %850 = vmatpush.xpose.msra.mxu0 0.0
        %851 = vmatpush.xpose.msra.mxu0 0.0
        %852 = vmatpush.xpose.msra.mxu0 0.0
        %853 = vmatpush.xpose.msra.mxu0 0.0
        %854 = vmatpush.xpose.msra.mxu0 0.0
        %855 = vmatpush.xpose.msra.mxu0 0.0
        %856 = vmatpush.xpose.msra.mxu0 0.0
        %857 = vmatpush.xpose.msra.mxu0 0.0
        %v858 = vand.u32 %v815, 4294901760
        %v859 = vsub.f32 %v815, %v858
        %v860 = vand.u32 %v859, 4294901760
        %v861 = vsub.f32 %v859, %v860
        %v862 = vand.u32 %v861, 4294901760
        %863 = vmatpush.xpose.msra.mxu0 %v862
        %v864 = vand.u32 %v813, 4294901760
        %865 = vmatmul.f32.gmra.mxu0 %v864
        %v866 = vpop.f32.mrf.mxu0
        %v867 = vadd.f32 %v841, %v866
        %868 = vdwg.mxu0
        %869 = vmatpush.xpose.msra.mxu0 0.0
        %870 = vmatpush.xpose.msra.mxu0 0.0
        %871 = vmatpush.xpose.msra.mxu0 0.0
        %872 = vmatpush.xpose.msra.mxu0 0.0
        %873 = vmatpush.xpose.msra.mxu0 0.0
        %874 = vmatpush.xpose.msra.mxu0 0.0
        %875 = vmatpush.xpose.msra.mxu0 0.0
        %876 = vmatpush.xpose.msra.mxu0 0.0
        %877 = vmatpush.xpose.msra.mxu0 0.0
        %878 = vmatpush.xpose.msra.mxu0 0.0
        %879 = vmatpush.xpose.msra.mxu0 0.0
        %880 = vmatpush.xpose.msra.mxu0 0.0
        %881 = vmatpush.xpose.msra.mxu0 0.0
        %882 = vmatpush.xpose.msra.mxu0 0.0
        %883 = vmatpush.xpose.msra.mxu0 0.0
        %v884 = vand.u32 %v815, 4294901760
        %v885 = vsub.f32 %v815, %v884
        %886 = vmatpush.xpose.msra.mxu0 %v885
        %v887 = vand.u32 %v813, 4294901760
        %v888 = vsub.f32 %v813, %v887
        %889 = vmatmul.f32.gmra.mxu0 %v888
        %v890 = vpop.f32.mrf.mxu0
        %v891 = vadd.f32 %v867, %v890
        %892 = vdwg.mxu0
        %893 = vmatpush.xpose.msra.mxu0 0.0
        %894 = vmatpush.xpose.msra.mxu0 0.0
        %895 = vmatpush.xpose.msra.mxu0 0.0
        %896 = vmatpush.xpose.msra.mxu0 0.0
        %897 = vmatpush.xpose.msra.mxu0 0.0
        %898 = vmatpush.xpose.msra.mxu0 0.0
        %899 = vmatpush.xpose.msra.mxu0 0.0
        %900 = vmatpush.xpose.msra.mxu0 0.0
        %901 = vmatpush.xpose.msra.mxu0 0.0
        %902 = vmatpush.xpose.msra.mxu0 0.0
        %903 = vmatpush.xpose.msra.mxu0 0.0
        %904 = vmatpush.xpose.msra.mxu0 0.0
        %905 = vmatpush.xpose.msra.mxu0 0.0
        %906 = vmatpush.xpose.msra.mxu0 0.0
        %907 = vmatpush.xpose.msra.mxu0 0.0
        %v908 = vand.u32 %v815, 4294901760
        %909 = vmatpush.xpose.msra.mxu0 %v908
        %v910 = vand.u32 %v813, 4294901760
        %v911 = vsub.f32 %v813, %v910
        %v912 = vand.u32 %v911, 4294901760
        %913 = vmatmul.f32.gmra.mxu0 %v912
        %v914 = vpop.f32.mrf.mxu0
        %v915 = vadd.f32 %v891, %v914
        %916 = vdwg.mxu0
        %917 = vmatpush.xpose.msra.mxu0 0.0
        %918 = vmatpush.xpose.msra.mxu0 0.0
        %919 = vmatpush.xpose.msra.mxu0 0.0
        %920 = vmatpush.xpose.msra.mxu0 0.0
        %921 = vmatpush.xpose.msra.mxu0 0.0
        %922 = vmatpush.xpose.msra.mxu0 0.0
        %923 = vmatpush.xpose.msra.mxu0 0.0
        %924 = vmatpush.xpose.msra.mxu0 0.0
        %925 = vmatpush.xpose.msra.mxu0 0.0
        %926 = vmatpush.xpose.msra.mxu0 0.0
        %927 = vmatpush.xpose.msra.mxu0 0.0
        %928 = vmatpush.xpose.msra.mxu0 0.0
        %929 = vmatpush.xpose.msra.mxu0 0.0
        %930 = vmatpush.xpose.msra.mxu0 0.0
        %931 = vmatpush.xpose.msra.mxu0 0.0
        %v932 = vand.u32 %v815, 4294901760
        %v933 = vsub.f32 %v815, %v932
        %v934 = vand.u32 %v933, 4294901760
        %935 = vmatpush.xpose.msra.mxu0 %v934
        %v936 = vand.u32 %v813, 4294901760
        %937 = vmatmul.f32.gmra.mxu0 %v936
        %v938 = vpop.f32.mrf.mxu0
        %v939 = vadd.f32 %v915, %v938
        %940 = vdwg.mxu0
        %941 = vmatpush.xpose.msra.mxu0 0.0
        %942 = vmatpush.xpose.msra.mxu0 0.0
        %943 = vmatpush.xpose.msra.mxu0 0.0
        %944 = vmatpush.xpose.msra.mxu0 0.0
        %945 = vmatpush.xpose.msra.mxu0 0.0
        %946 = vmatpush.xpose.msra.mxu0 0.0
        %947 = vmatpush.xpose.msra.mxu0 0.0
        %948 = vmatpush.xpose.msra.mxu0 0.0
        %949 = vmatpush.xpose.msra.mxu0 0.0
        %950 = vmatpush.xpose.msra.mxu0 0.0
        %951 = vmatpush.xpose.msra.mxu0 0.0
        %952 = vmatpush.xpose.msra.mxu0 0.0
        %953 = vmatpush.xpose.msra.mxu0 0.0
        %954 = vmatpush.xpose.msra.mxu0 0.0
        %955 = vmatpush.xpose.msra.mxu0 0.0
        %v956 = vand.u32 %v815, 4294901760
        %957 = vmatpush.xpose.msra.mxu0 %v956
        %v958 = vand.u32 %v813, 4294901760
        %959 = vmatmul.f32.gmra.mxu0 %v958
        %v960 = vpop.f32.mrf.mxu0
        %v961 = vadd.f32 %v939, %v960
        %962 = vdwg.mxu0
        %v963 = vsel %vm479, %v961, -inf
        %964 = vmax.xlane.f32.xlu0 %v963
        %v965 = vpop.xlane.xlu0 %964
        %v966 = vsub.f32 %v961, %v965
        %v967 = vmul.f32 %v966, 1.442695
        %v968 = vpow.pop %v967
        %v969 = vsel %vm479, %v968, 0.0
        %970 = vadd.xlane.f32.xlu0 %v969
        %v971 = vpop.xlane.xlu0 %970
        %v972 = vrcp.pop %v971
        %v973 = vmul.f32 %v971, %v972
        %v974 = vsub.f32 1.0, %v973
        %v975 = vmul.f32 %v972, %v974
        %v976 = vadd.f32 %v972, %v975
        %vm977 = vweird.f32 %v971
        %vm978 = vweird.f32 %v972
        %vm979 = vmor %vm977, %vm978
        %v980 = vsel %vm979, %v972, %v976
        %v981 = vand.u32 2147483647, %v971
        %vm982 = vcmp.eq.f32.partialorder %v981, 8.507059e+37
        %v983 = vand.u32 %v971, 2147483648
        %v984 = vor.u32 1.1754944e-38, %v983
        %v985 = vsel %vm982, %v984, %v980
        %986 = vrot.lane.b32.xlu0 %v807, 56
        %v987 = vpop.permute.xlu0 %986
        %v990 = vsel %vm479, %v968, 0
        %992 = vmatpush.msra.mxu0 0.0
        %993 = vmatpush.msra.mxu0 0.0
        %994 = vmatpush.msra.mxu0 0.0
        %995 = vmatpush.msra.mxu0 0.0
        %996 = vmatpush.msra.mxu0 0.0
        %997 = vmatpush.msra.mxu0 0.0
        %998 = vmatpush.msra.mxu0 0.0
        %999 = vmatpush.msra.mxu0 0.0
        %1000 = vmatpush.msra.mxu0 0.0
        %1001 = vmatpush.msra.mxu0 0.0
        %1002 = vmatpush.msra.mxu0 0.0
        %1003 = vmatpush.msra.mxu0 0.0
        %1004 = vmatpush.msra.mxu0 0.0
        %1005 = vmatpush.msra.mxu0 0.0
        %1006 = vmatpush.msra.mxu0 0.0
        %v1007 = vand.u32 %v987, 4294901760
        %1008 = vmatpush.msra.mxu0 %v1007
        %v1009 = vand.u32 %v990, 4294901760
        %v1010 = vsub.f32 %v990, %v1009
        %v1011 = vand.u32 %v1010, 4294901760
        %v1012 = vsub.f32 %v1010, %v1011
        %v1013 = vand.u32 %v1012, 4294901760
        %1014 = vmatmul.f32.gmra.mxu0 %v1013
        %v1015 = vpop.f32.mrf.mxu0
        %v1016 = vadd.f32 0.0, %v1015
        %1017 = vdwg.mxu0
        %1018 = vmatpush.msra.mxu0 0.0
        %1019 = vmatpush.msra.mxu0 0.0
        %1020 = vmatpush.msra.mxu0 0.0
        %1021 = vmatpush.msra.mxu0 0.0
        %1022 = vmatpush.msra.mxu0 0.0
        %1023 = vmatpush.msra.mxu0 0.0
        %1024 = vmatpush.msra.mxu0 0.0
        %1025 = vmatpush.msra.mxu0 0.0
        %1026 = vmatpush.msra.mxu0 0.0
        %1027 = vmatpush.msra.mxu0 0.0
        %1028 = vmatpush.msra.mxu0 0.0
        %1029 = vmatpush.msra.mxu0 0.0
        %1030 = vmatpush.msra.mxu0 0.0
        %1031 = vmatpush.msra.mxu0 0.0
        %1032 = vmatpush.msra.mxu0 0.0
        %v1033 = vand.u32 %v987, 4294901760
        %v1034 = vsub.f32 %v987, %v1033
        %v1035 = vand.u32 %v1034, 4294901760
        %v1036 = vsub.f32 %v1034, %v1035
        %v1037 = vand.u32 %v1036, 4294901760
        %1038 = vmatpush.msra.mxu0 %v1037
        %v1039 = vand.u32 %v990, 4294901760
        %1040 = vmatmul.f32.gmra.mxu0 %v1039
        %v1041 = vpop.f32.mrf.mxu0
        %v1042 = vadd.f32 %v1016, %v1041
        %1043 = vdwg.mxu0
        %1044 = vmatpush.msra.mxu0 0.0
        %1045 = vmatpush.msra.mxu0 0.0
        %1046 = vmatpush.msra.mxu0 0.0
        %1047 = vmatpush.msra.mxu0 0.0
        %1048 = vmatpush.msra.mxu0 0.0
        %1049 = vmatpush.msra.mxu0 0.0
        %1050 = vmatpush.msra.mxu0 0.0
        %1051 = vmatpush.msra.mxu0 0.0
        %1052 = vmatpush.msra.mxu0 0.0
        %1053 = vmatpush.msra.mxu0 0.0
        %1054 = vmatpush.msra.mxu0 0.0
        %1055 = vmatpush.msra.mxu0 0.0
        %1056 = vmatpush.msra.mxu0 0.0
        %1057 = vmatpush.msra.mxu0 0.0
        %1058 = vmatpush.msra.mxu0 0.0
        %v1059 = vand.u32 %v987, 4294901760
        %v1060 = vsub.f32 %v987, %v1059
        %1061 = vmatpush.msra.mxu0 %v1060
        %v1062 = vand.u32 %v990, 4294901760
        %v1063 = vsub.f32 %v990, %v1062
        %1064 = vmatmul.f32.gmra.mxu0 %v1063
        %v1065 = vpop.f32.mrf.mxu0
        %v1066 = vadd.f32 %v1042, %v1065
        %1067 = vdwg.mxu0
        %1068 = vmatpush.msra.mxu0 0.0
        %1069 = vmatpush.msra.mxu0 0.0
        %1070 = vmatpush.msra.mxu0 0.0
        %1071 = vmatpush.msra.mxu0 0.0
        %1072 = vmatpush.msra.mxu0 0.0
        %1073 = vmatpush.msra.mxu0 0.0
        %1074 = vmatpush.msra.mxu0 0.0
        %1075 = vmatpush.msra.mxu0 0.0
        %1076 = vmatpush.msra.mxu0 0.0
        %1077 = vmatpush.msra.mxu0 0.0
        %1078 = vmatpush.msra.mxu0 0.0
        %1079 = vmatpush.msra.mxu0 0.0
        %1080 = vmatpush.msra.mxu0 0.0
        %1081 = vmatpush.msra.mxu0 0.0
        %1082 = vmatpush.msra.mxu0 0.0
        %v1083 = vand.u32 %v987, 4294901760
        %1084 = vmatpush.msra.mxu0 %v1083
        %v1085 = vand.u32 %v990, 4294901760
        %v1086 = vsub.f32 %v990, %v1085
        %v1087 = vand.u32 %v1086, 4294901760
        %1088 = vmatmul.f32.gmra.mxu0 %v1087
        %v1089 = vpop.f32.mrf.mxu0
        %v1090 = vadd.f32 %v1066, %v1089
        %1091 = vdwg.mxu0
        %1092 = vmatpush.msra.mxu0 0.0
        %1093 = vmatpush.msra.mxu0 0.0
        %1094 = vmatpush.msra.mxu0 0.0
        %1095 = vmatpush.msra.mxu0 0.0
        %1096 = vmatpush.msra.mxu0 0.0
        %1097 = vmatpush.msra.mxu0 0.0
        %1098 = vmatpush.msra.mxu0 0.0
        %1099 = vmatpush.msra.mxu0 0.0
        %1100 = vmatpush.msra.mxu0 0.0
        %1101 = vmatpush.msra.mxu0 0.0
        %1102 = vmatpush.msra.mxu0 0.0
        %1103 = vmatpush.msra.mxu0 0.0
        %1104 = vmatpush.msra.mxu0 0.0
        %1105 = vmatpush.msra.mxu0 0.0
        %1106 = vmatpush.msra.mxu0 0.0
        %v1107 = vand.u32 %v987, 4294901760
        %v1108 = vsub.f32 %v987, %v1107
        %v1109 = vand.u32 %v1108, 4294901760
        %1110 = vmatpush.msra.mxu0 %v1109
        %v1111 = vand.u32 %v990, 4294901760
        %1112 = vmatmul.f32.gmra.mxu0 %v1111
        %v1113 = vpop.f32.mrf.mxu0
        %v1114 = vadd.f32 %v1090, %v1113
        %1115 = vdwg.mxu0
        %1116 = vmatpush.msra.mxu0 0.0
        %1117 = vmatpush.msra.mxu0 0.0
        %1118 = vmatpush.msra.mxu0 0.0
        %1119 = vmatpush.msra.mxu0 0.0
        %1120 = vmatpush.msra.mxu0 0.0
        %1121 = vmatpush.msra.mxu0 0.0
        %1122 = vmatpush.msra.mxu0 0.0
        %1123 = vmatpush.msra.mxu0 0.0
        %1124 = vmatpush.msra.mxu0 0.0
        %1125 = vmatpush.msra.mxu0 0.0
        %1126 = vmatpush.msra.mxu0 0.0
        %1127 = vmatpush.msra.mxu0 0.0
        %1128 = vmatpush.msra.mxu0 0.0
        %1129 = vmatpush.msra.mxu0 0.0
        %1130 = vmatpush.msra.mxu0 0.0
        %v1131 = vand.u32 %v987, 4294901760
        %1132 = vmatpush.msra.mxu0 %v1131
        %v1133 = vand.u32 %v990, 4294901760
        %1134 = vmatmul.f32.gmra.mxu0 %v1133
        %v1135 = vpop.f32.mrf.mxu0
        %v1136 = vadd.f32 %v1114, %v1135
        %1137 = vdwg.mxu0
        %v1138 = vmul.f32 %v1136, %v985
        %1140 = vrot.lane.b32.xlu0 %v1138, 8
        %v1141 = vpop.permute.xlu0 %1140
        %vm1143 = vcmask 130112
        %1144 = vst.msk [vmem:[#allocation3] sm:$0xff] %vm1143, %v1141
        %v1145 = vld [vmem:[#allocation2] sm:$0xff]
        %1147 = vrot.lane.b32.xlu0 %v1145, 112
        %v1148 = vpop.permute.xlu0 %1147
        %1149 = vrot.lane.b32.xlu0 %v1145, 80
        %v1150 = vpop.permute.xlu0 %1149
        %v1151 = vsel %vm479, %v1148, 0
        %v1153 = vsel %vm479, %v1150, 0
        %1155 = vmatpush.xpose.msra.mxu0 0.0
        %1156 = vmatpush.xpose.msra.mxu0 0.0
        %1157 = vmatpush.xpose.msra.mxu0 0.0
        %1158 = vmatpush.xpose.msra.mxu0 0.0
        %1159 = vmatpush.xpose.msra.mxu0 0.0
        %1160 = vmatpush.xpose.msra.mxu0 0.0
        %1161 = vmatpush.xpose.msra.mxu0 0.0
        %1162 = vmatpush.xpose.msra.mxu0 0.0
        %1163 = vmatpush.xpose.msra.mxu0 0.0
        %1164 = vmatpush.xpose.msra.mxu0 0.0
        %1165 = vmatpush.xpose.msra.mxu0 0.0
        %1166 = vmatpush.xpose.msra.mxu0 0.0
        %1167 = vmatpush.xpose.msra.mxu0 0.0
        %1168 = vmatpush.xpose.msra.mxu0 0.0
        %1169 = vmatpush.xpose.msra.mxu0 0.0
        %v1170 = vand.u32 %v1153, 4294901760
        %1171 = vmatpush.xpose.msra.mxu0 %v1170
        %v1172 = vand.u32 %v1151, 4294901760
        %v1173 = vsub.f32 %v1151, %v1172
        %v1174 = vand.u32 %v1173, 4294901760
        %v1175 = vsub.f32 %v1173, %v1174
        %v1176 = vand.u32 %v1175, 4294901760
        %1177 = vmatmul.f32.gmra.mxu0 %v1176
        %v1178 = vpop.f32.mrf.mxu0
        %v1179 = vadd.f32 0.0, %v1178
        %1180 = vdwg.mxu0
        %1181 = vmatpush.xpose.msra.mxu0 0.0
        %1182 = vmatpush.xpose.msra.mxu0 0.0
        %1183 = vmatpush.xpose.msra.mxu0 0.0
        %1184 = vmatpush.xpose.msra.mxu0 0.0
        %1185 = vmatpush.xpose.msra.mxu0 0.0
        %1186 = vmatpush.xpose.msra.mxu0 0.0
        %1187 = vmatpush.xpose.msra.mxu0 0.0
        %1188 = vmatpush.xpose.msra.mxu0 0.0
        %1189 = vmatpush.xpose.msra.mxu0 0.0
        %1190 = vmatpush.xpose.msra.mxu0 0.0
        %1191 = vmatpush.xpose.msra.mxu0 0.0
        %1192 = vmatpush.xpose.msra.mxu0 0.0
        %1193 = vmatpush.xpose.msra.mxu0 0.0
        %1194 = vmatpush.xpose.msra.mxu0 0.0
        %1195 = vmatpush.xpose.msra.mxu0 0.0
        %v1196 = vand.u32 %v1153, 4294901760
        %v1197 = vsub.f32 %v1153, %v1196
        %v1198 = vand.u32 %v1197, 4294901760
        %v1199 = vsub.f32 %v1197, %v1198
        %v1200 = vand.u32 %v1199, 4294901760
        %1201 = vmatpush.xpose.msra.mxu0 %v1200
        %v1202 = vand.u32 %v1151, 4294901760
        %1203 = vmatmul.f32.gmra.mxu0 %v1202
        %v1204 = vpop.f32.mrf.mxu0
        %v1205 = vadd.f32 %v1179, %v1204
        %1206 = vdwg.mxu0
        %1207 = vmatpush.xpose.msra.mxu0 0.0
        %1208 = vmatpush.xpose.msra.mxu0 0.0
        %1209 = vmatpush.xpose.msra.mxu0 0.0
        %1210 = vmatpush.xpose.msra.mxu0 0.0
        %1211 = vmatpush.xpose.msra.mxu0 0.0
        %1212 = vmatpush.xpose.msra.mxu0 0.0
        %1213 = vmatpush.xpose.msra.mxu0 0.0
        %1214 = vmatpush.xpose.msra.mxu0 0.0
        %1215 = vmatpush.xpose.msra.mxu0 0.0
        %1216 = vmatpush.xpose.msra.mxu0 0.0
        %1217 = vmatpush.xpose.msra.mxu0 0.0
        %1218 = vmatpush.xpose.msra.mxu0 0.0
        %1219 = vmatpush.xpose.msra.mxu0 0.0
        %1220 = vmatpush.xpose.msra.mxu0 0.0
        %1221 = vmatpush.xpose.msra.mxu0 0.0
        %v1222 = vand.u32 %v1153, 4294901760
        %v1223 = vsub.f32 %v1153, %v1222
        %1224 = vmatpush.xpose.msra.mxu0 %v1223
        %v1225 = vand.u32 %v1151, 4294901760
        %v1226 = vsub.f32 %v1151, %v1225
        %1227 = vmatmul.f32.gmra.mxu0 %v1226
        %v1228 = vpop.f32.mrf.mxu0
        %v1229 = vadd.f32 %v1205, %v1228
        %1230 = vdwg.mxu0
        %1231 = vmatpush.xpose.msra.mxu0 0.0
        %1232 = vmatpush.xpose.msra.mxu0 0.0
        %1233 = vmatpush.xpose.msra.mxu0 0.0
        %1234 = vmatpush.xpose.msra.mxu0 0.0
        %1235 = vmatpush.xpose.msra.mxu0 0.0
        %1236 = vmatpush.xpose.msra.mxu0 0.0
        %1237 = vmatpush.xpose.msra.mxu0 0.0
        %1238 = vmatpush.xpose.msra.mxu0 0.0
        %1239 = vmatpush.xpose.msra.mxu0 0.0
        %1240 = vmatpush.xpose.msra.mxu0 0.0
        %1241 = vmatpush.xpose.msra.mxu0 0.0
        %1242 = vmatpush.xpose.msra.mxu0 0.0
        %1243 = vmatpush.xpose.msra.mxu0 0.0
        %1244 = vmatpush.xpose.msra.mxu0 0.0
        %1245 = vmatpush.xpose.msra.mxu0 0.0
        %v1246 = vand.u32 %v1153, 4294901760
        %1247 = vmatpush.xpose.msra.mxu0 %v1246
        %v1248 = vand.u32 %v1151, 4294901760
        %v1249 = vsub.f32 %v1151, %v1248
        %v1250 = vand.u32 %v1249, 4294901760
        %1251 = vmatmul.f32.gmra.mxu0 %v1250
        %v1252 = vpop.f32.mrf.mxu0
        %v1253 = vadd.f32 %v1229, %v1252
        %1254 = vdwg.mxu0
        %1255 = vmatpush.xpose.msra.mxu0 0.0
        %1256 = vmatpush.xpose.msra.mxu0 0.0
        %1257 = vmatpush.xpose.msra.mxu0 0.0
        %1258 = vmatpush.xpose.msra.mxu0 0.0
        %1259 = vmatpush.xpose.msra.mxu0 0.0
        %1260 = vmatpush.xpose.msra.mxu0 0.0
        %1261 = vmatpush.xpose.msra.mxu0 0.0
        %1262 = vmatpush.xpose.msra.mxu0 0.0
        %1263 = vmatpush.xpose.msra.mxu0 0.0
        %1264 = vmatpush.xpose.msra.mxu0 0.0
        %1265 = vmatpush.xpose.msra.mxu0 0.0
        %1266 = vmatpush.xpose.msra.mxu0 0.0
        %1267 = vmatpush.xpose.msra.mxu0 0.0
        %1268 = vmatpush.xpose.msra.mxu0 0.0
        %1269 = vmatpush.xpose.msra.mxu0 0.0
        %v1270 = vand.u32 %v1153, 4294901760
        %v1271 = vsub.f32 %v1153, %v1270
        %v1272 = vand.u32 %v1271, 4294901760
        %1273 = vmatpush.xpose.msra.mxu0 %v1272
        %v1274 = vand.u32 %v1151, 4294901760
        %1275 = vmatmul.f32.gmra.mxu0 %v1274
        %v1276 = vpop.f32.mrf.mxu0
        %v1277 = vadd.f32 %v1253, %v1276
        %1278 = vdwg.mxu0
        %1279 = vmatpush.xpose.msra.mxu0 0.0
        %1280 = vmatpush.xpose.msra.mxu0 0.0
        %1281 = vmatpush.xpose.msra.mxu0 0.0
        %1282 = vmatpush.xpose.msra.mxu0 0.0
        %1283 = vmatpush.xpose.msra.mxu0 0.0
        %1284 = vmatpush.xpose.msra.mxu0 0.0
        %1285 = vmatpush.xpose.msra.mxu0 0.0
        %1286 = vmatpush.xpose.msra.mxu0 0.0
        %1287 = vmatpush.xpose.msra.mxu0 0.0
        %1288 = vmatpush.xpose.msra.mxu0 0.0
        %1289 = vmatpush.xpose.msra.mxu0 0.0
        %1290 = vmatpush.xpose.msra.mxu0 0.0
        %1291 = vmatpush.xpose.msra.mxu0 0.0
        %1292 = vmatpush.xpose.msra.mxu0 0.0
        %1293 = vmatpush.xpose.msra.mxu0 0.0
        %v1294 = vand.u32 %v1153, 4294901760
        %1295 = vmatpush.xpose.msra.mxu0 %v1294
        %v1296 = vand.u32 %v1151, 4294901760
        %1297 = vmatmul.f32.gmra.mxu0 %v1296
        %v1298 = vpop.f32.mrf.mxu0
        %v1299 = vadd.f32 %v1277, %v1298
        %1300 = vdwg.mxu0
        %v1301 = vsel %vm479, %v1299, -inf
        %1302 = vmax.xlane.f32.xlu0 %v1301
        %v1303 = vpop.xlane.xlu0 %1302
        %v1304 = vsub.f32 %v1299, %v1303
        %v1305 = vmul.f32 %v1304, 1.442695
        %v1306 = vpow.pop %v1305
        %v1307 = vsel %vm479, %v1306, 0.0
        %1308 = vadd.xlane.f32.xlu0 %v1307
        %v1309 = vpop.xlane.xlu0 %1308
        %v1310 = vrcp.pop %v1309
        %v1311 = vmul.f32 %v1309, %v1310
        %v1312 = vsub.f32 1.0, %v1311
        %v1313 = vmul.f32 %v1310, %v1312
        %v1314 = vadd.f32 %v1310, %v1313
        %vm1315 = vweird.f32 %v1309
        %vm1316 = vweird.f32 %v1310
        %vm1317 = vmor %vm1315, %vm1316
        %v1318 = vsel %vm1317, %v1310, %v1314
        %v1319 = vand.u32 2147483647, %v1309
        %vm1320 = vcmp.eq.f32.partialorder %v1319, 8.507059e+37
        %v1321 = vand.u32 %v1309, 2147483648
        %v1322 = vor.u32 1.1754944e-38, %v1321
        %v1323 = vsel %vm1320, %v1322, %v1318
        %1324 = vrot.lane.b32.xlu0 %v1145, 48
        %v1325 = vpop.permute.xlu0 %1324
        %v1328 = vsel %vm479, %v1306, 0
        %1330 = vmatpush.msra.mxu0 0.0
        %1331 = vmatpush.msra.mxu0 0.0
        %1332 = vmatpush.msra.mxu0 0.0
        %1333 = vmatpush.msra.mxu0 0.0
        %1334 = vmatpush.msra.mxu0 0.0
        %1335 = vmatpush.msra.mxu0 0.0
        %1336 = vmatpush.msra.mxu0 0.0
        %1337 = vmatpush.msra.mxu0 0.0
        %1338 = vmatpush.msra.mxu0 0.0
        %1339 = vmatpush.msra.mxu0 0.0
        %1340 = vmatpush.msra.mxu0 0.0
        %1341 = vmatpush.msra.mxu0 0.0
        %1342 = vmatpush.msra.mxu0 0.0
        %1343 = vmatpush.msra.mxu0 0.0
        %1344 = vmatpush.msra.mxu0 0.0
        %v1345 = vand.u32 %v1325, 4294901760
        %1346 = vmatpush.msra.mxu0 %v1345
        %v1347 = vand.u32 %v1328, 4294901760
        %v1348 = vsub.f32 %v1328, %v1347
        %v1349 = vand.u32 %v1348, 4294901760
        %v1350 = vsub.f32 %v1348, %v1349
        %v1351 = vand.u32 %v1350, 4294901760
        %1352 = vmatmul.f32.gmra.mxu0 %v1351
        %v1353 = vpop.f32.mrf.mxu0
        %v1354 = vadd.f32 0.0, %v1353
        %1355 = vdwg.mxu0
        %1356 = vmatpush.msra.mxu0 0.0
        %1357 = vmatpush.msra.mxu0 0.0
        %1358 = vmatpush.msra.mxu0 0.0
        %1359 = vmatpush.msra.mxu0 0.0
        %1360 = vmatpush.msra.mxu0 0.0
        %1361 = vmatpush.msra.mxu0 0.0
        %1362 = vmatpush.msra.mxu0 0.0
        %1363 = vmatpush.msra.mxu0 0.0
        %1364 = vmatpush.msra.mxu0 0.0
        %1365 = vmatpush.msra.mxu0 0.0
        %1366 = vmatpush.msra.mxu0 0.0
        %1367 = vmatpush.msra.mxu0 0.0
        %1368 = vmatpush.msra.mxu0 0.0
        %1369 = vmatpush.msra.mxu0 0.0
        %1370 = vmatpush.msra.mxu0 0.0
        %v1371 = vand.u32 %v1325, 4294901760
        %v1372 = vsub.f32 %v1325, %v1371
        %v1373 = vand.u32 %v1372, 4294901760
        %v1374 = vsub.f32 %v1372, %v1373
        %v1375 = vand.u32 %v1374, 4294901760
        %1376 = vmatpush.msra.mxu0 %v1375
        %v1377 = vand.u32 %v1328, 4294901760
        %1378 = vmatmul.f32.gmra.mxu0 %v1377
        %v1379 = vpop.f32.mrf.mxu0
        %v1380 = vadd.f32 %v1354, %v1379
        %1381 = vdwg.mxu0
        %1382 = vmatpush.msra.mxu0 0.0
        %1383 = vmatpush.msra.mxu0 0.0
        %1384 = vmatpush.msra.mxu0 0.0
        %1385 = vmatpush.msra.mxu0 0.0
        %1386 = vmatpush.msra.mxu0 0.0
        %1387 = vmatpush.msra.mxu0 0.0
        %1388 = vmatpush.msra.mxu0 0.0
        %1389 = vmatpush.msra.mxu0 0.0
        %1390 = vmatpush.msra.mxu0 0.0
        %1391 = vmatpush.msra.mxu0 0.0
        %1392 = vmatpush.msra.mxu0 0.0
        %1393 = vmatpush.msra.mxu0 0.0
        %1394 = vmatpush.msra.mxu0 0.0
        %1395 = vmatpush.msra.mxu0 0.0
        %1396 = vmatpush.msra.mxu0 0.0
        %v1397 = vand.u32 %v1325, 4294901760
        %v1398 = vsub.f32 %v1325, %v1397
        %1399 = vmatpush.msra.mxu0 %v1398
        %v1400 = vand.u32 %v1328, 4294901760
        %v1401 = vsub.f32 %v1328, %v1400
        %1402 = vmatmul.f32.gmra.mxu0 %v1401
        %v1403 = vpop.f32.mrf.mxu0
        %v1404 = vadd.f32 %v1380, %v1403
        %1405 = vdwg.mxu0
        %1406 = vmatpush.msra.mxu0 0.0
        %1407 = vmatpush.msra.mxu0 0.0
        %1408 = vmatpush.msra.mxu0 0.0
        %1409 = vmatpush.msra.mxu0 0.0
        %1410 = vmatpush.msra.mxu0 0.0
        %1411 = vmatpush.msra.mxu0 0.0
        %1412 = vmatpush.msra.mxu0 0.0
        %1413 = vmatpush.msra.mxu0 0.0
        %1414 = vmatpush.msra.mxu0 0.0
        %1415 = vmatpush.msra.mxu0 0.0
        %1416 = vmatpush.msra.mxu0 0.0
        %1417 = vmatpush.msra.mxu0 0.0
        %1418 = vmatpush.msra.mxu0 0.0
        %1419 = vmatpush.msra.mxu0 0.0
        %1420 = vmatpush.msra.mxu0 0.0
        %v1421 = vand.u32 %v1325, 4294901760
        %1422 = vmatpush.msra.mxu0 %v1421
        %v1423 = vand.u32 %v1328, 4294901760
        %v1424 = vsub.f32 %v1328, %v1423
        %v1425 = vand.u32 %v1424, 4294901760
        %1426 = vmatmul.f32.gmra.mxu0 %v1425
        %v1427 = vpop.f32.mrf.mxu0
        %v1428 = vadd.f32 %v1404, %v1427
        %1429 = vdwg.mxu0
        %1430 = vmatpush.msra.mxu0 0.0
        %1431 = vmatpush.msra.mxu0 0.0
        %1432 = vmatpush.msra.mxu0 0.0
        %1433 = vmatpush.msra.mxu0 0.0
        %1434 = vmatpush.msra.mxu0 0.0
        %1435 = vmatpush.msra.mxu0 0.0
        %1436 = vmatpush.msra.mxu0 0.0
        %1437 = vmatpush.msra.mxu0 0.0
        %1438 = vmatpush.msra.mxu0 0.0
        %1439 = vmatpush.msra.mxu0 0.0
        %1440 = vmatpush.msra.mxu0 0.0
        %1441 = vmatpush.msra.mxu0 0.0
        %1442 = vmatpush.msra.mxu0 0.0
        %1443 = vmatpush.msra.mxu0 0.0
        %1444 = vmatpush.msra.mxu0 0.0
        %v1445 = vand.u32 %v1325, 4294901760
        %v1446 = vsub.f32 %v1325, %v1445
        %v1447 = vand.u32 %v1446, 4294901760
        %1448 = vmatpush.msra.mxu0 %v1447
        %v1449 = vand.u32 %v1328, 4294901760
        %1450 = vmatmul.f32.gmra.mxu0 %v1449
        %v1451 = vpop.f32.mrf.mxu0
        %v1452 = vadd.f32 %v1428, %v1451
        %1453 = vdwg.mxu0
        %1454 = vmatpush.msra.mxu0 0.0
        %1455 = vmatpush.msra.mxu0 0.0
        %1456 = vmatpush.msra.mxu0 0.0
        %1457 = vmatpush.msra.mxu0 0.0
        %1458 = vmatpush.msra.mxu0 0.0
        %1459 = vmatpush.msra.mxu0 0.0
        %1460 = vmatpush.msra.mxu0 0.0
        %1461 = vmatpush.msra.mxu0 0.0
        %1462 = vmatpush.msra.mxu0 0.0
        %1463 = vmatpush.msra.mxu0 0.0
        %1464 = vmatpush.msra.mxu0 0.0
        %1465 = vmatpush.msra.mxu0 0.0
        %1466 = vmatpush.msra.mxu0 0.0
        %1467 = vmatpush.msra.mxu0 0.0
        %1468 = vmatpush.msra.mxu0 0.0
        %v1469 = vand.u32 %v1325, 4294901760
        %1470 = vmatpush.msra.mxu0 %v1469
        %v1471 = vand.u32 %v1328, 4294901760
        %1472 = vmatmul.f32.gmra.mxu0 %v1471
        %v1473 = vpop.f32.mrf.mxu0
        %v1474 = vadd.f32 %v1452, %v1473
        %1475 = vdwg.mxu0
        %v1476 = vmul.f32 %v1474, %v1323
        %1478 = vrot.lane.b32.xlu0 %v1476, 16
        %v1479 = vpop.permute.xlu0 %1478
        %vm1481 = vcmask 195712
        %1482 = vst.msk [vmem:[#allocation3] sm:$0xff] %vm1481, %v1479
        %v1483 = vld [vmem:[#allocation2] sm:$0xff]
        %1485 = vrot.lane.b32.xlu0 %v1483, 104
        %v1486 = vpop.permute.xlu0 %1485
        %1487 = vrot.lane.b32.xlu0 %v1483, 72
        %v1488 = vpop.permute.xlu0 %1487
        %v1489 = vsel %vm479, %v1486, 0
        %v1491 = vsel %vm479, %v1488, 0
        %1493 = vmatpush.xpose.msra.mxu0 0.0
        %1494 = vmatpush.xpose.msra.mxu0 0.0
        %1495 = vmatpush.xpose.msra.mxu0 0.0
        %1496 = vmatpush.xpose.msra.mxu0 0.0
        %1497 = vmatpush.xpose.msra.mxu0 0.0
        %1498 = vmatpush.xpose.msra.mxu0 0.0
        %1499 = vmatpush.xpose.msra.mxu0 0.0
        %1500 = vmatpush.xpose.msra.mxu0 0.0
        %1501 = vmatpush.xpose.msra.mxu0 0.0
        %1502 = vmatpush.xpose.msra.mxu0 0.0
        %1503 = vmatpush.xpose.msra.mxu0 0.0
        %1504 = vmatpush.xpose.msra.mxu0 0.0
        %1505 = vmatpush.xpose.msra.mxu0 0.0
        %1506 = vmatpush.xpose.msra.mxu0 0.0
        %1507 = vmatpush.xpose.msra.mxu0 0.0
        %v1508 = vand.u32 %v1491, 4294901760
        %1509 = vmatpush.xpose.msra.mxu0 %v1508
        %v1510 = vand.u32 %v1489, 4294901760
        %v1511 = vsub.f32 %v1489, %v1510
        %v1512 = vand.u32 %v1511, 4294901760
        %v1513 = vsub.f32 %v1511, %v1512
        %v1514 = vand.u32 %v1513, 4294901760
        %1515 = vmatmul.f32.gmra.mxu0 %v1514
        %v1516 = vpop.f32.mrf.mxu0
        %v1517 = vadd.f32 0.0, %v1516
        %1518 = vdwg.mxu0
        %1519 = vmatpush.xpose.msra.mxu0 0.0
        %1520 = vmatpush.xpose.msra.mxu0 0.0
        %1521 = vmatpush.xpose.msra.mxu0 0.0
        %1522 = vmatpush.xpose.msra.mxu0 0.0
        %1523 = vmatpush.xpose.msra.mxu0 0.0
        %1524 = vmatpush.xpose.msra.mxu0 0.0
        %1525 = vmatpush.xpose.msra.mxu0 0.0
        %1526 = vmatpush.xpose.msra.mxu0 0.0
        %1527 = vmatpush.xpose.msra.mxu0 0.0
        %1528 = vmatpush.xpose.msra.mxu0 0.0
        %1529 = vmatpush.xpose.msra.mxu0 0.0
        %1530 = vmatpush.xpose.msra.mxu0 0.0
        %1531 = vmatpush.xpose.msra.mxu0 0.0
        %1532 = vmatpush.xpose.msra.mxu0 0.0
        %1533 = vmatpush.xpose.msra.mxu0 0.0
        %v1534 = vand.u32 %v1491, 4294901760
        %v1535 = vsub.f32 %v1491, %v1534
        %v1536 = vand.u32 %v1535, 4294901760
        %v1537 = vsub.f32 %v1535, %v1536
        %v1538 = vand.u32 %v1537, 4294901760
        %1539 = vmatpush.xpose.msra.mxu0 %v1538
        %v1540 = vand.u32 %v1489, 4294901760
        %1541 = vmatmul.f32.gmra.mxu0 %v1540
        %v1542 = vpop.f32.mrf.mxu0
        %v1543 = vadd.f32 %v1517, %v1542
        %1544 = vdwg.mxu0
        %1545 = vmatpush.xpose.msra.mxu0 0.0
        %1546 = vmatpush.xpose.msra.mxu0 0.0
        %1547 = vmatpush.xpose.msra.mxu0 0.0
        %1548 = vmatpush.xpose.msra.mxu0 0.0
        %1549 = vmatpush.xpose.msra.mxu0 0.0
        %1550 = vmatpush.xpose.msra.mxu0 0.0
        %1551 = vmatpush.xpose.msra.mxu0 0.0
        %1552 = vmatpush.xpose.msra.mxu0 0.0
        %1553 = vmatpush.xpose.msra.mxu0 0.0
        %1554 = vmatpush.xpose.msra.mxu0 0.0
        %1555 = vmatpush.xpose.msra.mxu0 0.0
        %1556 = vmatpush.xpose.msra.mxu0 0.0
        %1557 = vmatpush.xpose.msra.mxu0 0.0
        %1558 = vmatpush.xpose.msra.mxu0 0.0
        %1559 = vmatpush.xpose.msra.mxu0 0.0
        %v1560 = vand.u32 %v1491, 4294901760
        %v1561 = vsub.f32 %v1491, %v1560
        %1562 = vmatpush.xpose.msra.mxu0 %v1561
        %v1563 = vand.u32 %v1489, 4294901760
        %v1564 = vsub.f32 %v1489, %v1563
        %1565 = vmatmul.f32.gmra.mxu0 %v1564
        %v1566 = vpop.f32.mrf.mxu0
        %v1567 = vadd.f32 %v1543, %v1566
        %1568 = vdwg.mxu0
        %1569 = vmatpush.xpose.msra.mxu0 0.0
        %1570 = vmatpush.xpose.msra.mxu0 0.0
        %1571 = vmatpush.xpose.msra.mxu0 0.0
        %1572 = vmatpush.xpose.msra.mxu0 0.0
        %1573 = vmatpush.xpose.msra.mxu0 0.0
        %1574 = vmatpush.xpose.msra.mxu0 0.0
        %1575 = vmatpush.xpose.msra.mxu0 0.0
        %1576 = vmatpush.xpose.msra.mxu0 0.0
        %1577 = vmatpush.xpose.msra.mxu0 0.0
        %1578 = vmatpush.xpose.msra.mxu0 0.0
        %1579 = vmatpush.xpose.msra.mxu0 0.0
        %1580 = vmatpush.xpose.msra.mxu0 0.0
        %1581 = vmatpush.xpose.msra.mxu0 0.0
        %1582 = vmatpush.xpose.msra.mxu0 0.0
        %1583 = vmatpush.xpose.msra.mxu0 0.0
        %v1584 = vand.u32 %v1491, 4294901760
        %1585 = vmatpush.xpose.msra.mxu0 %v1584
        %v1586 = vand.u32 %v1489, 4294901760
        %v1587 = vsub.f32 %v1489, %v1586
        %v1588 = vand.u32 %v1587, 4294901760
        %1589 = vmatmul.f32.gmra.mxu0 %v1588
        %v1590 = vpop.f32.mrf.mxu0
        %v1591 = vadd.f32 %v1567, %v1590
        %1592 = vdwg.mxu0
        %1593 = vmatpush.xpose.msra.mxu0 0.0
        %1594 = vmatpush.xpose.msra.mxu0 0.0
        %1595 = vmatpush.xpose.msra.mxu0 0.0
        %1596 = vmatpush.xpose.msra.mxu0 0.0
        %1597 = vmatpush.xpose.msra.mxu0 0.0
        %1598 = vmatpush.xpose.msra.mxu0 0.0
        %1599 = vmatpush.xpose.msra.mxu0 0.0
        %1600 = vmatpush.xpose.msra.mxu0 0.0
        %1601 = vmatpush.xpose.msra.mxu0 0.0
        %1602 = vmatpush.xpose.msra.mxu0 0.0
        %1603 = vmatpush.xpose.msra.mxu0 0.0
        %1604 = vmatpush.xpose.msra.mxu0 0.0
        %1605 = vmatpush.xpose.msra.mxu0 0.0
        %1606 = vmatpush.xpose.msra.mxu0 0.0
        %1607 = vmatpush.xpose.msra.mxu0 0.0
        %v1608 = vand.u32 %v1491, 4294901760
        %v1609 = vsub.f32 %v1491, %v1608
        %v1610 = vand.u32 %v1609, 4294901760
        %1611 = vmatpush.xpose.msra.mxu0 %v1610
        %v1612 = vand.u32 %v1489, 4294901760
        %1613 = vmatmul.f32.gmra.mxu0 %v1612
        %v1614 = vpop.f32.mrf.mxu0
        %v1615 = vadd.f32 %v1591, %v1614
        %1616 = vdwg.mxu0
        %1617 = vmatpush.xpose.msra.mxu0 0.0
        %1618 = vmatpush.xpose.msra.mxu0 0.0
        %1619 = vmatpush.xpose.msra.mxu0 0.0
        %1620 = vmatpush.xpose.msra.mxu0 0.0
        %1621 = vmatpush.xpose.msra.mxu0 0.0
        %1622 = vmatpush.xpose.msra.mxu0 0.0
        %1623 = vmatpush.xpose.msra.mxu0 0.0
        %1624 = vmatpush.xpose.msra.mxu0 0.0
        %1625 = vmatpush.xpose.msra.mxu0 0.0
        %1626 = vmatpush.xpose.msra.mxu0 0.0
        %1627 = vmatpush.xpose.msra.mxu0 0.0
        %1628 = vmatpush.xpose.msra.mxu0 0.0
        %1629 = vmatpush.xpose.msra.mxu0 0.0
        %1630 = vmatpush.xpose.msra.mxu0 0.0
        %1631 = vmatpush.xpose.msra.mxu0 0.0
        %v1632 = vand.u32 %v1491, 4294901760
        %1633 = vmatpush.xpose.msra.mxu0 %v1632
        %v1634 = vand.u32 %v1489, 4294901760
        %1635 = vmatmul.f32.gmra.mxu0 %v1634
        %v1636 = vpop.f32.mrf.mxu0
        %v1637 = vadd.f32 %v1615, %v1636
        %1638 = vdwg.mxu0
        %v1639 = vsel %vm479, %v1637, -inf
        %1640 = vmax.xlane.f32.xlu0 %v1639
        %v1641 = vpop.xlane.xlu0 %1640
        %v1642 = vsub.f32 %v1637, %v1641
        %v1643 = vmul.f32 %v1642, 1.442695
        %v1644 = vpow.pop %v1643
        %v1645 = vsel %vm479, %v1644, 0.0
        %1646 = vadd.xlane.f32.xlu0 %v1645
        %v1647 = vpop.xlane.xlu0 %1646
        %v1648 = vrcp.pop %v1647
        %v1649 = vmul.f32 %v1647, %v1648
        %v1650 = vsub.f32 1.0, %v1649
        %v1651 = vmul.f32 %v1648, %v1650
        %v1652 = vadd.f32 %v1648, %v1651
        %vm1653 = vweird.f32 %v1647
        %vm1654 = vweird.f32 %v1648
        %vm1655 = vmor %vm1653, %vm1654
        %v1656 = vsel %vm1655, %v1648, %v1652
        %v1657 = vand.u32 2147483647, %v1647
        %vm1658 = vcmp.eq.f32.partialorder %v1657, 8.507059e+37
        %v1659 = vand.u32 %v1647, 2147483648
        %v1660 = vor.u32 1.1754944e-38, %v1659
        %v1661 = vsel %vm1658, %v1660, %v1656
        %1662 = vrot.lane.b32.xlu0 %v1483, 40
        %v1663 = vpop.permute.xlu0 %1662
        %v1666 = vsel %vm479, %v1644, 0
        %1668 = vmatpush.msra.mxu0 0.0
        %1669 = vmatpush.msra.mxu0 0.0
        %1670 = vmatpush.msra.mxu0 0.0
        %1671 = vmatpush.msra.mxu0 0.0
        %1672 = vmatpush.msra.mxu0 0.0
        %1673 = vmatpush.msra.mxu0 0.0
        %1674 = vmatpush.msra.mxu0 0.0
        %1675 = vmatpush.msra.mxu0 0.0
        %1676 = vmatpush.msra.mxu0 0.0
        %1677 = vmatpush.msra.mxu0 0.0
        %1678 = vmatpush.msra.mxu0 0.0
        %1679 = vmatpush.msra.mxu0 0.0
        %1680 = vmatpush.msra.mxu0 0.0
        %1681 = vmatpush.msra.mxu0 0.0
        %1682 = vmatpush.msra.mxu0 0.0
        %v1683 = vand.u32 %v1663, 4294901760
        %1684 = vmatpush.msra.mxu0 %v1683
        %v1685 = vand.u32 %v1666, 4294901760
        %v1686 = vsub.f32 %v1666, %v1685
        %v1687 = vand.u32 %v1686, 4294901760
        %v1688 = vsub.f32 %v1686, %v1687
        %v1689 = vand.u32 %v1688, 4294901760
        %1690 = vmatmul.f32.gmra.mxu0 %v1689
        %v1691 = vpop.f32.mrf.mxu0
        %v1692 = vadd.f32 0.0, %v1691
        %1693 = vdwg.mxu0
        %1694 = vmatpush.msra.mxu0 0.0
        %1695 = vmatpush.msra.mxu0 0.0
        %1696 = vmatpush.msra.mxu0 0.0
        %1697 = vmatpush.msra.mxu0 0.0
        %1698 = vmatpush.msra.mxu0 0.0
        %1699 = vmatpush.msra.mxu0 0.0
        %1700 = vmatpush.msra.mxu0 0.0
        %1701 = vmatpush.msra.mxu0 0.0
        %1702 = vmatpush.msra.mxu0 0.0
        %1703 = vmatpush.msra.mxu0 0.0
        %1704 = vmatpush.msra.mxu0 0.0
        %1705 = vmatpush.msra.mxu0 0.0
        %1706 = vmatpush.msra.mxu0 0.0
        %1707 = vmatpush.msra.mxu0 0.0
        %1708 = vmatpush.msra.mxu0 0.0
        %v1709 = vand.u32 %v1663, 4294901760
        %v1710 = vsub.f32 %v1663, %v1709
        %v1711 = vand.u32 %v1710, 4294901760
        %v1712 = vsub.f32 %v1710, %v1711
        %v1713 = vand.u32 %v1712, 4294901760
        %1714 = vmatpush.msra.mxu0 %v1713
        %v1715 = vand.u32 %v1666, 4294901760
        %1716 = vmatmul.f32.gmra.mxu0 %v1715
        %v1717 = vpop.f32.mrf.mxu0
        %v1718 = vadd.f32 %v1692, %v1717
        %1719 = vdwg.mxu0
        %1720 = vmatpush.msra.mxu0 0.0
        %1721 = vmatpush.msra.mxu0 0.0
        %1722 = vmatpush.msra.mxu0 0.0
        %1723 = vmatpush.msra.mxu0 0.0
        %1724 = vmatpush.msra.mxu0 0.0
        %1725 = vmatpush.msra.mxu0 0.0
        %1726 = vmatpush.msra.mxu0 0.0
        %1727 = vmatpush.msra.mxu0 0.0
        %1728 = vmatpush.msra.mxu0 0.0
        %1729 = vmatpush.msra.mxu0 0.0
        %1730 = vmatpush.msra.mxu0 0.0
        %1731 = vmatpush.msra.mxu0 0.0
        %1732 = vmatpush.msra.mxu0 0.0
        %1733 = vmatpush.msra.mxu0 0.0
        %1734 = vmatpush.msra.mxu0 0.0
        %v1735 = vand.u32 %v1663, 4294901760
        %v1736 = vsub.f32 %v1663, %v1735
        %1737 = vmatpush.msra.mxu0 %v1736
        %v1738 = vand.u32 %v1666, 4294901760
        %v1739 = vsub.f32 %v1666, %v1738
        %1740 = vmatmul.f32.gmra.mxu0 %v1739
        %v1741 = vpop.f32.mrf.mxu0
        %v1742 = vadd.f32 %v1718, %v1741
        %1743 = vdwg.mxu0
        %1744 = vmatpush.msra.mxu0 0.0
        %1745 = vmatpush.msra.mxu0 0.0
        %1746 = vmatpush.msra.mxu0 0.0
        %1747 = vmatpush.msra.mxu0 0.0
        %1748 = vmatpush.msra.mxu0 0.0
        %1749 = vmatpush.msra.mxu0 0.0
        %1750 = vmatpush.msra.mxu0 0.0
        %1751 = vmatpush.msra.mxu0 0.0
        %1752 = vmatpush.msra.mxu0 0.0
        %1753 = vmatpush.msra.mxu0 0.0
        %1754 = vmatpush.msra.mxu0 0.0
        %1755 = vmatpush.msra.mxu0 0.0
        %1756 = vmatpush.msra.mxu0 0.0
        %1757 = vmatpush.msra.mxu0 0.0
        %1758 = vmatpush.msra.mxu0 0.0
        %v1759 = vand.u32 %v1663, 4294901760
        %1760 = vmatpush.msra.mxu0 %v1759
        %v1761 = vand.u32 %v1666, 4294901760
        %v1762 = vsub.f32 %v1666, %v1761
        %v1763 = vand.u32 %v1762, 4294901760
        %1764 = vmatmul.f32.gmra.mxu0 %v1763
        %v1765 = vpop.f32.mrf.mxu0
        %v1766 = vadd.f32 %v1742, %v1765
        %1767 = vdwg.mxu0
        %1768 = vmatpush.msra.mxu0 0.0
        %1769 = vmatpush.msra.mxu0 0.0
        %1770 = vmatpush.msra.mxu0 0.0
        %1771 = vmatpush.msra.mxu0 0.0
        %1772 = vmatpush.msra.mxu0 0.0
        %1773 = vmatpush.msra.mxu0 0.0
        %1774 = vmatpush.msra.mxu0 0.0
        %1775 = vmatpush.msra.mxu0 0.0
        %1776 = vmatpush.msra.mxu0 0.0
        %1777 = vmatpush.msra.mxu0 0.0
        %1778 = vmatpush.msra.mxu0 0.0
        %1779 = vmatpush.msra.mxu0 0.0
        %1780 = vmatpush.msra.mxu0 0.0
        %1781 = vmatpush.msra.mxu0 0.0
        %1782 = vmatpush.msra.mxu0 0.0
        %v1783 = vand.u32 %v1663, 4294901760
        %v1784 = vsub.f32 %v1663, %v1783
        %v1785 = vand.u32 %v1784, 4294901760
        %1786 = vmatpush.msra.mxu0 %v1785
        %v1787 = vand.u32 %v1666, 4294901760
        %1788 = vmatmul.f32.gmra.mxu0 %v1787
        %v1789 = vpop.f32.mrf.mxu0
        %v1790 = vadd.f32 %v1766, %v1789
        %1791 = vdwg.mxu0
        %1792 = vmatpush.msra.mxu0 0.0
        %1793 = vmatpush.msra.mxu0 0.0
        %1794 = vmatpush.msra.mxu0 0.0
        %1795 = vmatpush.msra.mxu0 0.0
        %1796 = vmatpush.msra.mxu0 0.0
        %1797 = vmatpush.msra.mxu0 0.0
        %1798 = vmatpush.msra.mxu0 0.0
        %1799 = vmatpush.msra.mxu0 0.0
        %1800 = vmatpush.msra.mxu0 0.0
        %1801 = vmatpush.msra.mxu0 0.0
        %1802 = vmatpush.msra.mxu0 0.0
        %1803 = vmatpush.msra.mxu0 0.0
        %1804 = vmatpush.msra.mxu0 0.0
        %1805 = vmatpush.msra.mxu0 0.0
        %1806 = vmatpush.msra.mxu0 0.0
        %v1807 = vand.u32 %v1663, 4294901760
        %1808 = vmatpush.msra.mxu0 %v1807
        %v1809 = vand.u32 %v1666, 4294901760
        %1810 = vmatmul.f32.gmra.mxu0 %v1809
        %v1811 = vpop.f32.mrf.mxu0
        %v1812 = vadd.f32 %v1790, %v1811
        %1813 = vdwg.mxu0
        %v1814 = vmul.f32 %v1812, %v1661
        %1816 = vrot.lane.b32.xlu0 %v1814, 24
        %v1817 = vpop.permute.xlu0 %1816
        %vm1819 = vcmask 261312
        %1820 = vst.msk [vmem:[#allocation3] sm:$0xff] %vm1819, %v1817
        %v1821 = vld [vmem:[#allocation3] sm:$0xff]
        %v1822 = vld [vmem:[#allocation9] sm:$0xff]
        %v1823 = vld [vmem:[#allocation9 + $0x8] sm:$0xff]
        %v1824 = vld [vmem:[#allocation9 + $0x10] sm:$0xff]
        %v1825 = vld [vmem:[#allocation9 + $0x18] sm:$0xff]
        %v1826 = vld [vmem:[%s4] sm:$0x1]
        %v1828 = vperm.slane %v1826, 0
        %v1831 = vsel %vm284, %v1821, 0
        %1833 = vmatpush.msra.mxu0 0.0
        %1834 = vmatpush.msra.mxu0 0.0
        %1835 = vmatpush.msra.mxu0 0.0
        %1836 = vmatpush.msra.mxu0 0.0
        %1837 = vmatpush.msra.mxu0 0.0
        %1838 = vmatpush.msra.mxu0 0.0
        %1839 = vmatpush.msra.mxu0 0.0
        %1840 = vmatpush.msra.mxu0 0.0
        %1841 = vmatpush.msra.mxu0 0.0
        %1842 = vmatpush.msra.mxu0 0.0
        %1843 = vmatpush.msra.mxu0 0.0
        %1844 = vmatpush.msra.mxu0 0.0
        %v1845 = vand.u32 %v1825, 4294901760
        %1846 = vmatpush.msra.mxu0 %v1845
        %v1847 = vand.u32 %v1824, 4294901760
        %1848 = vmatpush.msra.mxu0 %v1847
        %v1849 = vand.u32 %v1823, 4294901760
        %1850 = vmatpush.msra.mxu0 %v1849
        %v1851 = vand.u32 %v1822, 4294901760
        %1852 = vmatpush.msra.mxu0 %v1851
        %v1853 = vand.u32 %v1831, 4294901760
        %v1854 = vsub.f32 %v1831, %v1853
        %v1855 = vand.u32 %v1854, 4294901760
        %v1856 = vsub.f32 %v1854, %v1855
        %v1857 = vand.u32 %v1856, 4294901760
        %1858 = vmatmul.f32.gmra.mxu0 %v1857
        %v1859 = vpop.f32.mrf.mxu0
        %v1860 = vadd.f32 %v1828, %v1859
        %1861 = vdwg.mxu0
        %1862 = vmatpush.msra.mxu0 0.0
        %1863 = vmatpush.msra.mxu0 0.0
        %1864 = vmatpush.msra.mxu0 0.0
        %1865 = vmatpush.msra.mxu0 0.0
        %1866 = vmatpush.msra.mxu0 0.0
        %1867 = vmatpush.msra.mxu0 0.0
        %1868 = vmatpush.msra.mxu0 0.0
        %1869 = vmatpush.msra.mxu0 0.0
        %1870 = vmatpush.msra.mxu0 0.0
        %1871 = vmatpush.msra.mxu0 0.0
        %1872 = vmatpush.msra.mxu0 0.0
        %1873 = vmatpush.msra.mxu0 0.0
        %v1874 = vand.u32 %v1825, 4294901760
        %v1875 = vsub.f32 %v1825, %v1874
        %v1876 = vand.u32 %v1875, 4294901760
        %v1877 = vsub.f32 %v1875, %v1876
        %v1878 = vand.u32 %v1877, 4294901760
        %1879 = vmatpush.msra.mxu0 %v1878
        %v1880 = vand.u32 %v1824, 4294901760
        %v1881 = vsub.f32 %v1824, %v1880
        %v1882 = vand.u32 %v1881, 4294901760
        %v1883 = vsub.f32 %v1881, %v1882
        %v1884 = vand.u32 %v1883, 4294901760
        %1885 = vmatpush.msra.mxu0 %v1884
        %v1886 = vand.u32 %v1823, 4294901760
        %v1887 = vsub.f32 %v1823, %v1886
        %v1888 = vand.u32 %v1887, 4294901760
        %v1889 = vsub.f32 %v1887, %v1888
        %v1890 = vand.u32 %v1889, 4294901760
        %1891 = vmatpush.msra.mxu0 %v1890
        %v1892 = vand.u32 %v1822, 4294901760
        %v1893 = vsub.f32 %v1822, %v1892
        %v1894 = vand.u32 %v1893, 4294901760
        %v1895 = vsub.f32 %v1893, %v1894
        %v1896 = vand.u32 %v1895, 4294901760
        %1897 = vmatpush.msra.mxu0 %v1896
        %v1898 = vand.u32 %v1831, 4294901760
        %1899 = vmatmul.f32.gmra.mxu0 %v1898
        %v1900 = vpop.f32.mrf.mxu0
        %v1901 = vadd.f32 %v1860, %v1900
        %1902 = vdwg.mxu0
        %1903 = vmatpush.msra.mxu0 0.0
        %1904 = vmatpush.msra.mxu0 0.0
        %1905 = vmatpush.msra.mxu0 0.0
        %1906 = vmatpush.msra.mxu0 0.0
        %1907 = vmatpush.msra.mxu0 0.0
        %1908 = vmatpush.msra.mxu0 0.0
        %1909 = vmatpush.msra.mxu0 0.0
        %1910 = vmatpush.msra.mxu0 0.0
        %1911 = vmatpush.msra.mxu0 0.0
        %1912 = vmatpush.msra.mxu0 0.0
        %1913 = vmatpush.msra.mxu0 0.0
        %1914 = vmatpush.msra.mxu0 0.0
        %v1915 = vand.u32 %v1825, 4294901760
        %v1916 = vsub.f32 %v1825, %v1915
        %1917 = vmatpush.msra.mxu0 %v1916
        %v1918 = vand.u32 %v1824, 4294901760
        %v1919 = vsub.f32 %v1824, %v1918
        %1920 = vmatpush.msra.mxu0 %v1919
        %v1921 = vand.u32 %v1823, 4294901760
        %v1922 = vsub.f32 %v1823, %v1921
        %1923 = vmatpush.msra.mxu0 %v1922
        %v1924 = vand.u32 %v1822, 4294901760
        %v1925 = vsub.f32 %v1822, %v1924
        %1926 = vmatpush.msra.mxu0 %v1925
        %v1927 = vand.u32 %v1831, 4294901760
        %v1928 = vsub.f32 %v1831, %v1927
        %1929 = vmatmul.f32.gmra.mxu0 %v1928
        %v1930 = vpop.f32.mrf.mxu0
        %v1931 = vadd.f32 %v1901, %v1930
        %1932 = vdwg.mxu0
        %1933 = vmatpush.msra.mxu0 0.0
        %1934 = vmatpush.msra.mxu0 0.0
        %1935 = vmatpush.msra.mxu0 0.0
        %1936 = vmatpush.msra.mxu0 0.0
        %1937 = vmatpush.msra.mxu0 0.0
        %1938 = vmatpush.msra.mxu0 0.0
        %1939 = vmatpush.msra.mxu0 0.0
        %1940 = vmatpush.msra.mxu0 0.0
        %1941 = vmatpush.msra.mxu0 0.0
        %1942 = vmatpush.msra.mxu0 0.0
        %1943 = vmatpush.msra.mxu0 0.0
        %1944 = vmatpush.msra.mxu0 0.0
        %v1945 = vand.u32 %v1825, 4294901760
        %1946 = vmatpush.msra.mxu0 %v1945
        %v1947 = vand.u32 %v1824, 4294901760
        %1948 = vmatpush.msra.mxu0 %v1947
        %v1949 = vand.u32 %v1823, 4294901760
        %1950 = vmatpush.msra.mxu0 %v1949
        %v1951 = vand.u32 %v1822, 4294901760
        %1952 = vmatpush.msra.mxu0 %v1951
        %v1953 = vand.u32 %v1831, 4294901760
        %v1954 = vsub.f32 %v1831, %v1953
        %v1955 = vand.u32 %v1954, 4294901760
        %1956 = vmatmul.f32.gmra.mxu0 %v1955
        %v1957 = vpop.f32.mrf.mxu0
        %v1958 = vadd.f32 %v1931, %v1957
        %1959 = vdwg.mxu0
        %1960 = vmatpush.msra.mxu0 0.0
        %1961 = vmatpush.msra.mxu0 0.0
        %1962 = vmatpush.msra.mxu0 0.0
        %1963 = vmatpush.msra.mxu0 0.0
        %1964 = vmatpush.msra.mxu0 0.0
        %1965 = vmatpush.msra.mxu0 0.0
        %1966 = vmatpush.msra.mxu0 0.0
        %1967 = vmatpush.msra.mxu0 0.0
        %1968 = vmatpush.msra.mxu0 0.0
        %1969 = vmatpush.msra.mxu0 0.0
        %1970 = vmatpush.msra.mxu0 0.0
        %1971 = vmatpush.msra.mxu0 0.0
        %v1972 = vand.u32 %v1825, 4294901760
        %v1973 = vsub.f32 %v1825, %v1972
        %v1974 = vand.u32 %v1973, 4294901760
        %1975 = vmatpush.msra.mxu0 %v1974
        %v1976 = vand.u32 %v1824, 4294901760
        %v1977 = vsub.f32 %v1824, %v1976
        %v1978 = vand.u32 %v1977, 4294901760
        %1979 = vmatpush.msra.mxu0 %v1978
        %v1980 = vand.u32 %v1823, 4294901760
        %v1981 = vsub.f32 %v1823, %v1980
        %v1982 = vand.u32 %v1981, 4294901760
        %1983 = vmatpush.msra.mxu0 %v1982
        %v1984 = vand.u32 %v1822, 4294901760
        %v1985 = vsub.f32 %v1822, %v1984
        %v1986 = vand.u32 %v1985, 4294901760
        %1987 = vmatpush.msra.mxu0 %v1986
        %v1988 = vand.u32 %v1831, 4294901760
        %1989 = vmatmul.f32.gmra.mxu0 %v1988
        %v1990 = vpop.f32.mrf.mxu0
        %v1991 = vadd.f32 %v1958, %v1990
        %1992 = vdwg.mxu0
        %1993 = vmatpush.msra.mxu0 0.0
        %1994 = vmatpush.msra.mxu0 0.0
        %1995 = vmatpush.msra.mxu0 0.0
        %1996 = vmatpush.msra.mxu0 0.0
        %1997 = vmatpush.msra.mxu0 0.0
        %1998 = vmatpush.msra.mxu0 0.0
        %1999 = vmatpush.msra.mxu0 0.0
        %2000 = vmatpush.msra.mxu0 0.0
        %2001 = vmatpush.msra.mxu0 0.0
        %2002 = vmatpush.msra.mxu0 0.0
        %2003 = vmatpush.msra.mxu0 0.0
        %2004 = vmatpush.msra.mxu0 0.0
        %v2005 = vand.u32 %v1825, 4294901760
        %2006 = vmatpush.msra.mxu0 %v2005
        %v2007 = vand.u32 %v1824, 4294901760
        %2008 = vmatpush.msra.mxu0 %v2007
        %v2009 = vand.u32 %v1823, 4294901760
        %2010 = vmatpush.msra.mxu0 %v2009
        %v2011 = vand.u32 %v1822, 4294901760
        %2012 = vmatpush.msra.mxu0 %v2011
        %v2013 = vand.u32 %v1831, 4294901760
        %2014 = vmatmul.f32.gmra.mxu0 %v2013
        %v2015 = vpop.f32.mrf.mxu0
        %v2016 = vadd.f32 %v1991, %v2015
        %2017 = vdwg.mxu0
        %2018 = vst.msk [vmem:[%s274] sm:$0xff] %vm284, %v2016
        %s2019 = sand.u32 %s141, 1
        %s2020 = scalar_lea.sflag [#allocation6], %s2019
        %s2021 = sand.u32 %s141, 1
        %s2022 = smul.addr %s2021, 8
        %s2023 = scalar_lea.vmem [#allocation10], %s2022
        // Predicated region
        $region53: #{tpu_custom_call.1} parent=39 // pred_check
          %p2024 = pneg %p151
        $region54: #{tpu_custom_call.1} parent=39 // pred_check_branch
          %2026 = sbr.rel (%p2024) target = $region56
        $region55: #{tpu_custom_call.1} parent=39 // pred_region
          %2028 = vsyncadd %s2020, 0
          %s2029 = smul.addr %s23, 8
          %s2030 = scalar_lea.hbm %s5, %s2029
          %s2032 = sshll.u32 %s2023, 4
          %s2033 = int_to_ptr.vmem [resolvable:$true] %s2032
          %s2034 = sshll.u32 %s2030, 4
          %s2035 = int_to_ptr.hbm [resolvable:$true] %s2034
          %2037 = dma.vmem_to_hbm [thread:$0]  %s2033, 128, %s2035, %s2020
        $region56: #{tpu_custom_call.1} parent=39 // pred_fallthru
          _
      $region40: #{tpu_custom_call.1} parent=5 // pred_fallthru
        _
      %p2038 = scmp.le.s32.totalorder 2, %s18
      // Predicated region
      $region57: #{tpu_custom_call.1} parent=5 // pred_check
        %p2039 = pneg %p2038
      $region58: #{tpu_custom_call.1} parent=5 // pred_check_branch
        %2041 = sbr.rel (%p2039) target = $region60
      $region59: #{tpu_custom_call.1} parent=5 // pred_region
        %s2042 = ssub.s32 %s18, 2
        // Predicated region
        $region61: #{tpu_custom_call.1} parent=59 // pred_check
          %p2043 = pneg %p157
        $region62: #{tpu_custom_call.1} parent=59 // pred_check_branch
          %2045 = sbr.rel (%p2043) target = $region64
        $region63: #{tpu_custom_call.1} parent=59 // pred_region
          %s2046 = sand.u32 %s142, 1
          %s2047 = scalar_lea.sflag [#allocation6], %s2046
          %s2048 = sand.u32 %s142, 1
          %s2049 = smul.addr %s2048, 8
          %s2050 = scalar_lea.vmem [#allocation10], %s2049
          %2052 = dma.done %s2047, 128
        $region64: #{tpu_custom_call.1} parent=59 // pred_fallthru
          _
      $region60: #{tpu_custom_call.1} parent=5 // pred_fallthru
        _
    $region6: #{tpu_custom_call.1} parent=1 // loop_footer
      %s22 = sadd.s32 1, %s18
    $region7: #{tpu_custom_call.1} parent=1 // loop_footer_branch
      %17 = sbr.rel target = $region3
    $region8: #{tpu_custom_call.1} parent=1 // loop_exit
      _
    %2053 = vsyncpa [#allocation5], 1
    %s2054 = scalar_lea.sflag [#allocation5], 1
    %2055 = vsyncpa %s2054, 1
    %2056 = vsyncpa [#allocation8], 1
    %2057 = vsyncpa [#allocation6], 1
    %s2058 = scalar_lea.sflag [#allocation6], 1
    %2059 = vsyncpa %s2058, 1

</llo_original>
